<compile_context>
chip_gen: v7x
topology: tpu7x:2x2x1
jax: 0.10.0
libtpu: 0.0.40
codegen_flags: <defaults>
</compile_context>

<pallas_src>
from math import sqrt

import jax
import jax.numpy as jnp
from jax.experimental import pallas as pl
from jax.experimental.pallas import tpu as pltpu


def _mha_kernel(num_heads, dk):

    def kernel(tgt_ref, mem_ref, wqT_ref, wkT_ref, wvT_ref, woT_ref, bo_ref,
               out_ref):
        Bt, n, d = tgt_ref.shape
        m = mem_ref.shape[1]
        R = Bt * n

        # Flatten (Bt, n)/(Bt, m) rows so each projection is one big MXU matmul.
        x = tgt_ref[...].reshape(R, d).astype(jnp.bfloat16)
        mem = mem_ref[...].reshape(Bt * m, d).astype(jnp.bfloat16)

        wq = wqT_ref[...].astype(jnp.bfloat16)   # (d, d), pre-transposed;
        wk = wkT_ref[...].astype(jnp.bfloat16)   # 1/sqrt(dk) folded into wq.
        wv = wvT_ref[...].astype(jnp.bfloat16)

        q = jnp.dot(x, wq, preferred_element_type=jnp.float32).reshape(Bt, n, d)
        k = jnp.dot(mem, wk, preferred_element_type=jnp.float32).reshape(Bt, m, d)
        v = jnp.dot(mem, wv, preferred_element_type=jnp.float32).reshape(Bt, m, d)

        # Per-head attention, batched over the Bt batch rows via 3-D einsums.
        # Head concat + output projection are fused:
        #   out = sum_h  msg_h @ Wo.T[h*dk:(h+1)*dk, :]
        out_acc = jnp.zeros((R, d), jnp.float32)
        for h in range(num_heads):                          # static, small
            lo = h * dk
            qh = q[:, :, lo:lo + dk].astype(jnp.bfloat16)   # (Bt, n, dk)
            kh = k[:, :, lo:lo + dk].astype(jnp.bfloat16)   # (Bt, m, dk)
            vh = v[:, :, lo:lo + dk].astype(jnp.bfloat16)   # (Bt, m, dk)

            # A = (Q @ K.T) / sqrt(dk)  (scale already folded into Wq)
            s = jnp.einsum('bnd,bmd->bnm', qh, kh,
                           preferred_element_type=jnp.float32)
            s = s - jnp.max(s, axis=-1, keepdims=True)
            p = jnp.exp(s)
            p = p * pl.reciprocal(jnp.sum(p, axis=-1, keepdims=True),
                                  approx=True)

            msg = jnp.einsum('bnm,bmd->bnd', p.astype(jnp.bfloat16), vh,
                             preferred_element_type=jnp.float32)  # (Bt, n, dk)
            msg2 = msg.reshape(R, dk).astype(jnp.bfloat16)
            wo_h = woT_ref[lo:lo + dk, :].astype(jnp.bfloat16)    # (dk, d)
            out_acc = out_acc + jnp.dot(msg2, wo_h,
                                        preferred_element_type=jnp.float32)

        out = out_acc + bo_ref[...]                          # (R, d) + (1, d)
        out_ref[...] = out.reshape(Bt, n, d).astype(out_ref.dtype)

    return kernel


def _pick_block_b(B, max_block=8):
    bb = min(B, max_block)
    while B % bb:
        bb -= 1
    return bb


def multi_head_att_slower(tgt, memory, wq, wk, wv, wo, bo, *, num_heads,
                          block_b=None):
    B, n, d_model = tgt.shape
    m = memory.shape[1]
    dk = d_model // num_heads
    assert dk * num_heads == d_model

    if block_b is None:
        block_b = _pick_block_b(B)
    assert B % block_b == 0

    scale = 1.0 / sqrt(dk)
    # Host-side (amortized) weight prep: torch Linear is y = x @ W.T + b, so
    # pass W.T; fold the softmax 1/sqrt(dk) scale into Wq.T for free.
    wqT = (wq.T * scale).astype(tgt.dtype)
    wkT = wk.T.astype(tgt.dtype)
    wvT = wv.T.astype(tgt.dtype)
    woT = wo.T.astype(tgt.dtype)
    bo2 = bo.reshape(1, d_model).astype(jnp.float32)

    full_w = pl.BlockSpec((d_model, d_model), lambda b: (0, 0))
    return pl.pallas_call(
        _mha_kernel(num_heads, dk),
        out_shape=jax.ShapeDtypeStruct((B, n, d_model), tgt.dtype),
        grid_spec=pltpu.PrefetchScalarGridSpec(
            num_scalar_prefetch=0,
            grid=(B // block_b,),
            in_specs=[
                pl.BlockSpec((block_b, n, d_model), lambda b: (b, 0, 0)),  # tgt
                pl.BlockSpec((block_b, m, d_model), lambda b: (b, 0, 0)),  # mem
                full_w,                                                    # WqT
                full_w,                                                    # WkT
                full_w,                                                    # WvT
                full_w,                                                    # WoT
                pl.BlockSpec((1, d_model), lambda b: (0, 0)),              # bo
            ],
            out_specs=pl.BlockSpec((block_b, n, d_model), lambda b: (b, 0, 0)),
        ),
        compiler_params=pltpu.CompilerParams(
            dimension_semantics=("parallel",)),
        # TODO(synk): at large d_model / m, tile the K/V sequence flash-style
        # and set vmem_limit_bytes against v7x's 64 MiB VMEM budget.
    )(tgt, memory, wqT, wkT, wvT, woT, bo2)


def _reference(tgt, memory, wq, wk, wv, wo, bo, *, num_heads):
    # Pure-JAX f32 reference mirroring the PyTorch forward.
    B, n, d = tgt.shape
    m = memory.shape[1]
    dk = d // num_heads
    Q = (tgt @ wq.T).reshape(B, n, num_heads, dk).transpose(0, 2, 1, 3)
    K = (memory @ wk.T).reshape(B, m, num_heads, dk).transpose(0, 2, 1, 3)
    V = (memory @ wv.T).reshape(B, m, num_heads, dk).transpose(0, 2, 1, 3)
    A = (Q @ K.transpose(0, 1, 3, 2)) / sqrt(dk)
    A = jax.nn.softmax(A, axis=-1)
    msg = (A @ V).transpose(0, 2, 1, 3).reshape(B, n, d)
    return msg @ wo.T + bo


if __name__ == "__main__":
    B, n, m = 2, 8, 8
    d_model, num_heads = 32, 4

    key = jax.random.PRNGKey(0)
    k_tgt, k_mem, k_wq, k_wk, k_wv, k_wo, k_bo = jax.random.split(key, 7)

    tgt = jax.random.normal(k_tgt, (B, n, d_model), dtype=jnp.float32)
    memory = jax.random.normal(k_mem, (B, m, d_model), dtype=jnp.float32)

    # Deterministic parameter init (shapes match nn.Linear(d_model, d_model)):
    # Uq/Uk/Uv have no bias (qkv_bias=False default), Uo has a bias.
    lim = 1.0 / sqrt(d_model)
    wq = jax.random.uniform(k_wq, (d_model, d_model), jnp.float32, -lim, lim)
    wk = jax.random.uniform(k_wk, (d_model, d_model), jnp.float32, -lim, lim)
    wv = jax.random.uniform(k_wv, (d_model, d_model), jnp.float32, -lim, lim)
    wo = jax.random.uniform(k_wo, (d_model, d_model), jnp.float32, -lim, lim)
    bo = jax.random.uniform(k_bo, (d_model,), jnp.float32, -lim, lim)

    out = multi_head_att_slower(tgt, memory, wq, wk, wv, wo, bo,
                                num_heads=num_heads)
    out = jax.block_until_ready(out)

    ref = _reference(tgt, memory, wq, wk, wv, wo, bo, num_heads=num_heads)
    assert out.shape == (B, n, d_model)
    # Tolerance relaxed vs. pure-f32: bf16 MXU operands + approx reciprocal are
    # an expected precision change, not a bug.
    assert jnp.allclose(out, ref, atol=5e-2, rtol=5e-2), "mismatch vs reference"

    print("KERNEL_OK")
</pallas_src>

<mosaic_0001>
module attributes {stable_mosaic.version = 11 : i64} {
  func.func @kernel(%arg0: i32, %arg1: memref<2x8x32xf32, #tpu.memory_space<vmem>>, %arg2: memref<2x8x32xf32, #tpu.memory_space<vmem>>, %arg3: memref<32x32xf32, #tpu.memory_space<vmem>>, %arg4: memref<32x32xf32, #tpu.memory_space<vmem>>, %arg5: memref<32x32xf32, #tpu.memory_space<vmem>>, %arg6: memref<32x32xf32, #tpu.memory_space<vmem>>, %arg7: memref<1x32xf32, #tpu.memory_space<vmem>>, %arg8: memref<2x8x32xf32, #tpu.memory_space<vmem>>) attributes {dimension_semantics = [#tpu.dimension_semantics<parallel>], iteration_bounds = array<i64: 1>, scalar_prefetch = 0 : i64, scratch_operands = 0 : i64, tpu.core_type = #tpu.core_type<tc>, window_params = [{transform_indices = @transform_0, window_bounds = array<i64: 2, 8, 32>}, {transform_indices = @transform_1, window_bounds = array<i64: 2, 8, 32>}, {pipeline_mode = #tpu.pipeline_mode<synchronous>, transform_indices = @transform_2, window_bounds = array<i64: 32, 32>}, {pipeline_mode = #tpu.pipeline_mode<synchronous>, transform_indices = @transform_3, window_bounds = array<i64: 32, 32>}, {pipeline_mode = #tpu.pipeline_mode<synchronous>, transform_indices = @transform_4, window_bounds = array<i64: 32, 32>}, {pipeline_mode = #tpu.pipeline_mode<synchronous>, transform_indices = @transform_5, window_bounds = array<i64: 32, 32>}, {pipeline_mode = #tpu.pipeline_mode<synchronous>, transform_indices = @transform_6, window_bounds = array<i64: 1, 32>}, {transform_indices = @transform_7, window_bounds = array<i64: 2, 8, 32>}]} {
    %c0 = arith.constant 0 : index
    %c0_0 = arith.constant 0 : index
    %c0_1 = arith.constant 0 : index
    %0 = vector.load %arg1[%c0, %c0_0, %c0_1] : memref<2x8x32xf32, #tpu.memory_space<vmem>>, vector<2x8x32xf32>
    %1 = vector.shape_cast %0 : vector<2x8x32xf32> to vector<16x32xf32>
    %2 = arith.truncf %1 : vector<16x32xf32> to vector<16x32xbf16>
    %c0_2 = arith.constant 0 : index
    %c0_3 = arith.constant 0 : index
    %c0_4 = arith.constant 0 : index
    %3 = vector.load %arg2[%c0_2, %c0_3, %c0_4] : memref<2x8x32xf32, #tpu.memory_space<vmem>>, vector<2x8x32xf32>
    %4 = vector.shape_cast %3 : vector<2x8x32xf32> to vector<16x32xf32>
    %5 = arith.truncf %4 : vector<16x32xf32> to vector<16x32xbf16>
    %c0_5 = arith.constant 0 : index
    %c0_6 = arith.constant 0 : index
    %6 = vector.load %arg3[%c0_5, %c0_6] : memref<32x32xf32, #tpu.memory_space<vmem>>, vector<32x32xf32>
    %7 = arith.truncf %6 : vector<32x32xf32> to vector<32x32xbf16>
    %c0_7 = arith.constant 0 : index
    %c0_8 = arith.constant 0 : index
    %8 = vector.load %arg4[%c0_7, %c0_8] : memref<32x32xf32, #tpu.memory_space<vmem>>, vector<32x32xf32>
    %9 = arith.truncf %8 : vector<32x32xf32> to vector<32x32xbf16>
    %c0_9 = arith.constant 0 : index
    %c0_10 = arith.constant 0 : index
    %10 = vector.load %arg5[%c0_9, %c0_10] : memref<32x32xf32, #tpu.memory_space<vmem>>, vector<32x32xf32>
    %11 = arith.truncf %10 : vector<32x32xf32> to vector<32x32xbf16>
    %cst = arith.constant dense<0.000000e+00> : vector<16x32xf32>
    %12 = tpu.matmul %2, %7, %cst {dimension_numbers = #tpu.dot_dimension_numbers<[1], [0], [0], [1], [0, 0, 1, 1], [], []>} : vector<16x32xbf16>, vector<32x32xbf16>, vector<16x32xf32> -> vector<16x32xf32>
    %13 = vector.shape_cast %12 : vector<16x32xf32> to vector<2x8x32xf32>
    %cst_11 = arith.constant dense<0.000000e+00> : vector<16x32xf32>
    %14 = tpu.matmul %5, %9, %cst_11 {dimension_numbers = #tpu.dot_dimension_numbers<[1], [0], [0], [1], [0, 0, 1, 1], [], []>} : vector<16x32xbf16>, vector<32x32xbf16>, vector<16x32xf32> -> vector<16x32xf32>
    %15 = vector.shape_cast %14 : vector<16x32xf32> to vector<2x8x32xf32>
    %cst_12 = arith.constant dense<0.000000e+00> : vector<16x32xf32>
    %16 = tpu.matmul %5, %11, %cst_12 {dimension_numbers = #tpu.dot_dimension_numbers<[1], [0], [0], [1], [0, 0, 1, 1], [], []>} : vector<16x32xbf16>, vector<32x32xbf16>, vector<16x32xf32> -> vector<16x32xf32>
    %17 = vector.shape_cast %16 : vector<16x32xf32> to vector<2x8x32xf32>
    %cst_13 = arith.constant 0.000000e+00 : f32
    %18 = vector.broadcast %cst_13 : f32 to vector<16x32xf32>
    %19 = vector.extract_strided_slice %13 {offsets = [0, 0, 0], sizes = [2, 8, 8], strides = [1, 1, 1]} : vector<2x8x32xf32> to vector<2x8x8xf32>
    %20 = arith.truncf %19 : vector<2x8x8xf32> to vector<2x8x8xbf16>
    %21 = vector.extract_strided_slice %15 {offsets = [0, 0, 0], sizes = [2, 8, 8], strides = [1, 1, 1]} : vector<2x8x32xf32> to vector<2x8x8xf32>
    %22 = arith.truncf %21 : vector<2x8x8xf32> to vector<2x8x8xbf16>
    %23 = vector.extract_strided_slice %17 {offsets = [0, 0, 0], sizes = [2, 8, 8], strides = [1, 1, 1]} : vector<2x8x32xf32> to vector<2x8x8xf32>
    %24 = arith.truncf %23 : vector<2x8x8xf32> to vector<2x8x8xbf16>
    "tpu.trace_start"() <{level = 10 : i32, message = "bnd,bmd->bnm"}> : () -> ()
    %cst_14 = arith.constant dense<0.000000e+00> : vector<2x8x8xf32>
    %25 = tpu.matmul %20, %22, %cst_14 {dimension_numbers = #tpu.dot_dimension_numbers<[2], [2], [1], [1], [0, 0, 0, 1, 1, 1], [0], [0]>} : vector<2x8x8xbf16>, vector<2x8x8xbf16>, vector<2x8x8xf32> -> vector<2x8x8xf32>
    "tpu.trace_stop"() : () -> ()
    %cst_15 = arith.constant dense<0xFF800000> : vector<2x8xf32>
    %26 = vector.multi_reduction <maximumf>, %25, %cst_15 [2] : vector<2x8x8xf32> to vector<2x8xf32>
    %27 = vector.shape_cast %26 : vector<2x8xf32> to vector<2x8x1xf32>
    %28 = vector.broadcast %27 : vector<2x8x1xf32> to vector<2x8x8xf32>
    %29 = arith.subf %25, %28 : vector<2x8x8xf32>
    %30 = math.exp %29 : vector<2x8x8xf32>
    %cst_16 = arith.constant dense<0.000000e+00> : vector<2x8xf32>
    %31 = vector.multi_reduction <add>, %30, %cst_16 [2] : vector<2x8x8xf32> to vector<2x8xf32>
    %32 = vector.shape_cast %31 : vector<2x8xf32> to vector<2x8x1xf32>
    %33 = tpu.reciprocal %32 {approx = true} : vector<2x8x1xf32> -> vector<2x8x1xf32>
    %34 = vector.broadcast %33 : vector<2x8x1xf32> to vector<2x8x8xf32>
    %35 = arith.mulf %30, %34 : vector<2x8x8xf32>
    %36 = arith.truncf %35 : vector<2x8x8xf32> to vector<2x8x8xbf16>
    "tpu.trace_start"() <{level = 10 : i32, message = "bnm,bmd->bnd"}> : () -> ()
    %cst_17 = arith.constant dense<0.000000e+00> : vector<2x8x8xf32>
    %37 = tpu.matmul %36, %24, %cst_17 {dimension_numbers = #tpu.dot_dimension_numbers<[2], [1], [1], [2], [0, 0, 0, 1, 1, 2], [0], [0]>} : vector<2x8x8xbf16>, vector<2x8x8xbf16>, vector<2x8x8xf32> -> vector<2x8x8xf32>
    "tpu.trace_stop"() : () -> ()
    %38 = vector.shape_cast %37 : vector<2x8x8xf32> to vector<16x8xf32>
    %39 = arith.truncf %38 : vector<16x8xf32> to vector<16x8xbf16>
    %c0_18 = arith.constant 0 : index
    %c0_19 = arith.constant 0 : index
    %40 = vector.load %arg6[%c0_18, %c0_19] : memref<32x32xf32, #tpu.memory_space<vmem>>, vector<8x32xf32>
    %41 = arith.truncf %40 : vector<8x32xf32> to vector<8x32xbf16>
    %cst_20 = arith.constant dense<0.000000e+00> : vector<16x32xf32>
    %42 = tpu.matmul %39, %41, %cst_20 {dimension_numbers = #tpu.dot_dimension_numbers<[1], [0], [0], [1], [0, 0, 1, 1], [], []>} : vector<16x8xbf16>, vector<8x32xbf16>, vector<16x32xf32> -> vector<16x32xf32>
    %43 = arith.addf %18, %42 : vector<16x32xf32>
    %44 = vector.extract_strided_slice %13 {offsets = [0, 0, 8], sizes = [2, 8, 8], strides = [1, 1, 1]} : vector<2x8x32xf32> to vector<2x8x8xf32>
    %45 = arith.truncf %44 : vector<2x8x8xf32> to vector<2x8x8xbf16>
    %46 = vector.extract_strided_slice %15 {offsets = [0, 0, 8], sizes = [2, 8, 8], strides = [1, 1, 1]} : vector<2x8x32xf32> to vector<2x8x8xf32>
    %47 = arith.truncf %46 : vector<2x8x8xf32> to vector<2x8x8xbf16>
    %48 = vector.extract_strided_slice %17 {offsets = [0, 0, 8], sizes = [2, 8, 8], strides = [1, 1, 1]} : vector<2x8x32xf32> to vector<2x8x8xf32>
    %49 = arith.truncf %48 : vector<2x8x8xf32> to vector<2x8x8xbf16>
    "tpu.trace_start"() <{level = 10 : i32, message = "bnd,bmd->bnm"}> : () -> ()
    %cst_21 = arith.constant dense<0.000000e+00> : vector<2x8x8xf32>
    %50 = tpu.matmul %45, %47, %cst_21 {dimension_numbers = #tpu.dot_dimension_numbers<[2], [2], [1], [1], [0, 0, 0, 1, 1, 1], [0], [0]>} : vector<2x8x8xbf16>, vector<2x8x8xbf16>, vector<2x8x8xf32> -> vector<2x8x8xf32>
    "tpu.trace_stop"() : () -> ()
    %cst_22 = arith.constant dense<0xFF800000> : vector<2x8xf32>
    %51 = vector.multi_reduction <maximumf>, %50, %cst_22 [2] : vector<2x8x8xf32> to vector<2x8xf32>
    %52 = vector.shape_cast %51 : vector<2x8xf32> to vector<2x8x1xf32>
    %53 = vector.broadcast %52 : vector<2x8x1xf32> to vector<2x8x8xf32>
    %54 = arith.subf %50, %53 : vector<2x8x8xf32>
    %55 = math.exp %54 : vector<2x8x8xf32>
    %cst_23 = arith.constant dense<0.000000e+00> : vector<2x8xf32>
    %56 = vector.multi_reduction <add>, %55, %cst_23 [2] : vector<2x8x8xf32> to vector<2x8xf32>
    %57 = vector.shape_cast %56 : vector<2x8xf32> to vector<2x8x1xf32>
    %58 = tpu.reciprocal %57 {approx = true} : vector<2x8x1xf32> -> vector<2x8x1xf32>
    %59 = vector.broadcast %58 : vector<2x8x1xf32> to vector<2x8x8xf32>
    %60 = arith.mulf %55, %59 : vector<2x8x8xf32>
    %61 = arith.truncf %60 : vector<2x8x8xf32> to vector<2x8x8xbf16>
    "tpu.trace_start"() <{level = 10 : i32, message = "bnm,bmd->bnd"}> : () -> ()
    %cst_24 = arith.constant dense<0.000000e+00> : vector<2x8x8xf32>
    %62 = tpu.matmul %61, %49, %cst_24 {dimension_numbers = #tpu.dot_dimension_numbers<[2], [1], [1], [2], [0, 0, 0, 1, 1, 2], [0], [0]>} : vector<2x8x8xbf16>, vector<2x8x8xbf16>, vector<2x8x8xf32> -> vector<2x8x8xf32>
    "tpu.trace_stop"() : () -> ()
    %63 = vector.shape_cast %62 : vector<2x8x8xf32> to vector<16x8xf32>
    %64 = arith.truncf %63 : vector<16x8xf32> to vector<16x8xbf16>
    %c8 = arith.constant 8 : index
    %c0_25 = arith.constant 0 : index
    %65 = vector.load %arg6[%c8, %c0_25] : memref<32x32xf32, #tpu.memory_space<vmem>>, vector<8x32xf32>
    %66 = arith.truncf %65 : vector<8x32xf32> to vector<8x32xbf16>
    %cst_26 = arith.constant dense<0.000000e+00> : vector<16x32xf32>
    %67 = tpu.matmul %64, %66, %cst_26 {dimension_numbers = #tpu.dot_dimension_numbers<[1], [0], [0], [1], [0, 0, 1, 1], [], []>} : vector<16x8xbf16>, vector<8x32xbf16>, vector<16x32xf32> -> vector<16x32xf32>
    %68 = arith.addf %43, %67 : vector<16x32xf32>
    %69 = vector.extract_strided_slice %13 {offsets = [0, 0, 16], sizes = [2, 8, 8], strides = [1, 1, 1]} : vector<2x8x32xf32> to vector<2x8x8xf32>
    %70 = arith.truncf %69 : vector<2x8x8xf32> to vector<2x8x8xbf16>
    %71 = vector.extract_strided_slice %15 {offsets = [0, 0, 16], sizes = [2, 8, 8], strides = [1, 1, 1]} : vector<2x8x32xf32> to vector<2x8x8xf32>
    %72 = arith.truncf %71 : vector<2x8x8xf32> to vector<2x8x8xbf16>
    %73 = vector.extract_strided_slice %17 {offsets = [0, 0, 16], sizes = [2, 8, 8], strides = [1, 1, 1]} : vector<2x8x32xf32> to vector<2x8x8xf32>
    %74 = arith.truncf %73 : vector<2x8x8xf32> to vector<2x8x8xbf16>
    "tpu.trace_start"() <{level = 10 : i32, message = "bnd,bmd->bnm"}> : () -> ()
    %cst_27 = arith.constant dense<0.000000e+00> : vector<2x8x8xf32>
    %75 = tpu.matmul %70, %72, %cst_27 {dimension_numbers = #tpu.dot_dimension_numbers<[2], [2], [1], [1], [0, 0, 0, 1, 1, 1], [0], [0]>} : vector<2x8x8xbf16>, vector<2x8x8xbf16>, vector<2x8x8xf32> -> vector<2x8x8xf32>
    "tpu.trace_stop"() : () -> ()
    %cst_28 = arith.constant dense<0xFF800000> : vector<2x8xf32>
    %76 = vector.multi_reduction <maximumf>, %75, %cst_28 [2] : vector<2x8x8xf32> to vector<2x8xf32>
    %77 = vector.shape_cast %76 : vector<2x8xf32> to vector<2x8x1xf32>
    %78 = vector.broadcast %77 : vector<2x8x1xf32> to vector<2x8x8xf32>
    %79 = arith.subf %75, %78 : vector<2x8x8xf32>
    %80 = math.exp %79 : vector<2x8x8xf32>
    %cst_29 = arith.constant dense<0.000000e+00> : vector<2x8xf32>
    %81 = vector.multi_reduction <add>, %80, %cst_29 [2] : vector<2x8x8xf32> to vector<2x8xf32>
    %82 = vector.shape_cast %81 : vector<2x8xf32> to vector<2x8x1xf32>
    %83 = tpu.reciprocal %82 {approx = true} : vector<2x8x1xf32> -> vector<2x8x1xf32>
    %84 = vector.broadcast %83 : vector<2x8x1xf32> to vector<2x8x8xf32>
    %85 = arith.mulf %80, %84 : vector<2x8x8xf32>
    %86 = arith.truncf %85 : vector<2x8x8xf32> to vector<2x8x8xbf16>
    "tpu.trace_start"() <{level = 10 : i32, message = "bnm,bmd->bnd"}> : () -> ()
    %cst_30 = arith.constant dense<0.000000e+00> : vector<2x8x8xf32>
    %87 = tpu.matmul %86, %74, %cst_30 {dimension_numbers = #tpu.dot_dimension_numbers<[2], [1], [1], [2], [0, 0, 0, 1, 1, 2], [0], [0]>} : vector<2x8x8xbf16>, vector<2x8x8xbf16>, vector<2x8x8xf32> -> vector<2x8x8xf32>
    "tpu.trace_stop"() : () -> ()
    %88 = vector.shape_cast %87 : vector<2x8x8xf32> to vector<16x8xf32>
    %89 = arith.truncf %88 : vector<16x8xf32> to vector<16x8xbf16>
    %c16 = arith.constant 16 : index
    %c0_31 = arith.constant 0 : index
    %90 = vector.load %arg6[%c16, %c0_31] : memref<32x32xf32, #tpu.memory_space<vmem>>, vector<8x32xf32>
    %91 = arith.truncf %90 : vector<8x32xf32> to vector<8x32xbf16>
    %cst_32 = arith.constant dense<0.000000e+00> : vector<16x32xf32>
    %92 = tpu.matmul %89, %91, %cst_32 {dimension_numbers = #tpu.dot_dimension_numbers<[1], [0], [0], [1], [0, 0, 1, 1], [], []>} : vector<16x8xbf16>, vector<8x32xbf16>, vector<16x32xf32> -> vector<16x32xf32>
    %93 = arith.addf %68, %92 : vector<16x32xf32>
    %94 = vector.extract_strided_slice %13 {offsets = [0, 0, 24], sizes = [2, 8, 8], strides = [1, 1, 1]} : vector<2x8x32xf32> to vector<2x8x8xf32>
    %95 = arith.truncf %94 : vector<2x8x8xf32> to vector<2x8x8xbf16>
    %96 = vector.extract_strided_slice %15 {offsets = [0, 0, 24], sizes = [2, 8, 8], strides = [1, 1, 1]} : vector<2x8x32xf32> to vector<2x8x8xf32>
    %97 = arith.truncf %96 : vector<2x8x8xf32> to vector<2x8x8xbf16>
    %98 = vector.extract_strided_slice %17 {offsets = [0, 0, 24], sizes = [2, 8, 8], strides = [1, 1, 1]} : vector<2x8x32xf32> to vector<2x8x8xf32>
    %99 = arith.truncf %98 : vector<2x8x8xf32> to vector<2x8x8xbf16>
    "tpu.trace_start"() <{level = 10 : i32, message = "bnd,bmd->bnm"}> : () -> ()
    %cst_33 = arith.constant dense<0.000000e+00> : vector<2x8x8xf32>
    %100 = tpu.matmul %95, %97, %cst_33 {dimension_numbers = #tpu.dot_dimension_numbers<[2], [2], [1], [1], [0, 0, 0, 1, 1, 1], [0], [0]>} : vector<2x8x8xbf16>, vector<2x8x8xbf16>, vector<2x8x8xf32> -> vector<2x8x8xf32>
    "tpu.trace_stop"() : () -> ()
    %cst_34 = arith.constant dense<0xFF800000> : vector<2x8xf32>
    %101 = vector.multi_reduction <maximumf>, %100, %cst_34 [2] : vector<2x8x8xf32> to vector<2x8xf32>
    %102 = vector.shape_cast %101 : vector<2x8xf32> to vector<2x8x1xf32>
    %103 = vector.broadcast %102 : vector<2x8x1xf32> to vector<2x8x8xf32>
    %104 = arith.subf %100, %103 : vector<2x8x8xf32>
    %105 = math.exp %104 : vector<2x8x8xf32>
    %cst_35 = arith.constant dense<0.000000e+00> : vector<2x8xf32>
    %106 = vector.multi_reduction <add>, %105, %cst_35 [2] : vector<2x8x8xf32> to vector<2x8xf32>
    %107 = vector.shape_cast %106 : vector<2x8xf32> to vector<2x8x1xf32>
    %108 = tpu.reciprocal %107 {approx = true} : vector<2x8x1xf32> -> vector<2x8x1xf32>
    %109 = vector.broadcast %108 : vector<2x8x1xf32> to vector<2x8x8xf32>
    %110 = arith.mulf %105, %109 : vector<2x8x8xf32>
    %111 = arith.truncf %110 : vector<2x8x8xf32> to vector<2x8x8xbf16>
    "tpu.trace_start"() <{level = 10 : i32, message = "bnm,bmd->bnd"}> : () -> ()
    %cst_36 = arith.constant dense<0.000000e+00> : vector<2x8x8xf32>
    %112 = tpu.matmul %111, %99, %cst_36 {dimension_numbers = #tpu.dot_dimension_numbers<[2], [1], [1], [2], [0, 0, 0, 1, 1, 2], [0], [0]>} : vector<2x8x8xbf16>, vector<2x8x8xbf16>, vector<2x8x8xf32> -> vector<2x8x8xf32>
    "tpu.trace_stop"() : () -> ()
    %113 = vector.shape_cast %112 : vector<2x8x8xf32> to vector<16x8xf32>
    %114 = arith.truncf %113 : vector<16x8xf32> to vector<16x8xbf16>
    %c24 = arith.constant 24 : index
    %c0_37 = arith.constant 0 : index
    %115 = vector.load %arg6[%c24, %c0_37] : memref<32x32xf32, #tpu.memory_space<vmem>>, vector<8x32xf32>
    %116 = arith.truncf %115 : vector<8x32xf32> to vector<8x32xbf16>
    %cst_38 = arith.constant dense<0.000000e+00> : vector<16x32xf32>
    %117 = tpu.matmul %114, %116, %cst_38 {dimension_numbers = #tpu.dot_dimension_numbers<[1], [0], [0], [1], [0, 0, 1, 1], [], []>} : vector<16x8xbf16>, vector<8x32xbf16>, vector<16x32xf32> -> vector<16x32xf32>
    %118 = arith.addf %93, %117 : vector<16x32xf32>
    %c0_39 = arith.constant 0 : index
    %c0_40 = arith.constant 0 : index
    %119 = vector.load %arg7[%c0_39, %c0_40] : memref<1x32xf32, #tpu.memory_space<vmem>>, vector<1x32xf32>
    %120 = vector.broadcast %119 : vector<1x32xf32> to vector<16x32xf32>
    %121 = arith.addf %118, %120 : vector<16x32xf32>
    %122 = vector.shape_cast %121 : vector<16x32xf32> to vector<2x8x32xf32>
    %c0_41 = arith.constant 0 : index
    %c0_42 = arith.constant 0 : index
    %c0_43 = arith.constant 0 : index
    %123 = vector.load %arg8[%c0_41, %c0_42, %c0_43] : memref<2x8x32xf32, #tpu.memory_space<vmem>>, vector<2x8x32xf32>
    tpu.vector_store %arg8[%c0_41, %c0_42, %c0_43], %122 {strides = array<i32>} : memref<2x8x32xf32, #tpu.memory_space<vmem>>, vector<2x8x32xf32>,
    return
  }
  func.func @transform_0(%arg0: i32) -> (i32, i32, i32) {
    %c0_i32 = arith.constant 0 : i32
    %c0_i32_0 = arith.constant 0 : i32
    %c0_i32_1 = arith.constant 0 : i32
    return %arg0, %c0_i32, %c0_i32_0 : i32, i32, i32
  }
  func.func @transform_1(%arg0: i32) -> (i32, i32, i32) {
    %c0_i32 = arith.constant 0 : i32
    %c0_i32_0 = arith.constant 0 : i32
    %c0_i32_1 = arith.constant 0 : i32
    return %arg0, %c0_i32, %c0_i32_0 : i32, i32, i32
  }
  func.func @transform_2(%arg0: i32) -> (i32, i32) {
    %c0_i32 = arith.constant 0 : i32
    %c0_i32_0 = arith.constant 0 : i32
    %c0_i32_1 = arith.constant 0 : i32
    return %c0_i32, %c0_i32_0 : i32, i32
  }
  func.func @transform_3(%arg0: i32) -> (i32, i32) {
    %c0_i32 = arith.constant 0 : i32
    %c0_i32_0 = arith.constant 0 : i32
    %c0_i32_1 = arith.constant 0 : i32
    return %c0_i32, %c0_i32_0 : i32, i32
  }
  func.func @transform_4(%arg0: i32) -> (i32, i32) {
    %c0_i32 = arith.constant 0 : i32
    %c0_i32_0 = arith.constant 0 : i32
    %c0_i32_1 = arith.constant 0 : i32
    return %c0_i32, %c0_i32_0 : i32, i32
  }
  func.func @transform_5(%arg0: i32) -> (i32, i32) {
    %c0_i32 = arith.constant 0 : i32
    %c0_i32_0 = arith.constant 0 : i32
    %c0_i32_1 = arith.constant 0 : i32
    return %c0_i32, %c0_i32_0 : i32, i32
  }
  func.func @transform_6(%arg0: i32) -> (i32, i32) {
    %c0_i32 = arith.constant 0 : i32
    %c0_i32_0 = arith.constant 0 : i32
    %c0_i32_1 = arith.constant 0 : i32
    return %c0_i32, %c0_i32_0 : i32, i32
  }
  func.func @transform_7(%arg0: i32) -> (i32, i32, i32) {
    %c0_i32 = arith.constant 0 : i32
    %c0_i32_0 = arith.constant 0 : i32
    %c0_i32_1 = arith.constant 0 : i32
    return %arg0, %c0_i32, %c0_i32_0 : i32, i32, i32
  }
}

</mosaic_0001>

<llo_original>
// kernel: tpu_custom_call.1
$region0: #{tpu_custom_call.1}
  #allocation0 [shape = 'u32[]', space=smem, size = 0x4, offset = 0x4, fixed_abs, tag = 'smem constant byte address 0x4 - core index']
  #allocation1 [shape = 'u32[144,128]{1,0:T(1,128)}', space=vmem, size = 0x12000, scoped, tag = 'internal scratch']
  %s0 = inlined_call_operand.hbm [shape: f32[2,8,32], index: 0, kind: input, shape index: {}]
  %s1 = inlined_call_operand.hbm [shape: f32[2,8,32], index: 1, kind: input, shape index: {}]
  %s2 = inlined_call_operand.hbm [shape: f32[32,32], index: 2, kind: input, shape index: {}]
  %s3 = inlined_call_operand.hbm [shape: f32[32,32], index: 3, kind: input, shape index: {}]
  %s4 = inlined_call_operand.hbm [shape: f32[32,32], index: 4, kind: input, shape index: {}]
  %s5 = inlined_call_operand.hbm [shape: f32[32,32], index: 5, kind: input, shape index: {}]
  %s6 = inlined_call_operand.vmem [shape: f32[1,32], index: 6, kind: input, shape index: {}]
  %s7 = inlined_call_operand.hbm [shape: f32[2,8,32], index: 7, kind: output, shape index: {}]
  %s8 = sld [smem:[#allocation0]]
  $region62: #{tpu_custom_call.1} parent=0
    _
  %s10 = ssub.s32 1, %s8
  %s11 = scalar_select 0, %s10, %s8
  $region1: #{tpu_custom_call.1} parent=0
    #allocation2 [shape = 'u8[8192]{0}', space=vmem, size = 0x2000, scoped, tag = 'input window, operand 0, single buffered']
    #allocation3 [shape = 's32[1]{0}', space=sflag, size = 0x4, scoped, tag = 'scoped memory for tpu_custom_call.1']
    #allocation4 [shape = 's32[1]{0}', space=sflag, size = 0x4, scoped, tag = 'scoped memory for tpu_custom_call.1']
    #allocation5 [shape = 'u8[8192]{0}', space=vmem, size = 0x2000, scoped, tag = 'input window, operand 1, single buffered']
    #allocation6 [shape = 's32[1]{0}', space=sflag, size = 0x4, scoped, tag = 'scoped memory for tpu_custom_call.1']
    #allocation7 [shape = 'u8[16384]{0}', space=vmem, size = 0x4000, scoped, tag = 'input window, operand 2, single buffered']
    #allocation8 [shape = 'u8[16384]{0}', space=vmem, size = 0x4000, scoped, tag = 'input window, operand 3, single buffered']
    #allocation9 [shape = 's32[1]{0}', space=sflag, size = 0x4, scoped, tag = 'scoped memory for tpu_custom_call.1']
    #allocation10 [shape = 'u8[16384]{0}', space=vmem, size = 0x4000, scoped, tag = 'input window, operand 4, single buffered']
    #allocation11 [shape = 'u8[16384]{0}', space=vmem, size = 0x4000, scoped, tag = 'input window, operand 5, single buffered']
    #allocation12 [shape = 's32[1]{0}', space=sflag, size = 0x4, scoped, tag = 'scoped memory for tpu_custom_call.1']
    #allocation13 [shape = 'u8[8192]{0}', space=vmem, size = 0x2000, scoped, tag = 'output window, operand 0, single buffered']
    %12 = vsyncpa [#allocation3], 0
    %13 = vsyncpa [#allocation6], 0
    %14 = vsyncpa [#allocation9], 0
    %15 = vsyncpa [#allocation12], 0
    %16 = vsyncpa [#allocation4], 0
    // Predicated region
    $region2: #{tpu_custom_call.1} parent=1 // pred_check
      _
    $region3: #{tpu_custom_call.1} parent=1 // pred_check_branch
      %18 = sbr.rel (0) target = $region5
    $region4: #{tpu_custom_call.1} parent=1 // pred_region
      %s20 = ssub.s32 256, 256
      %21 = vsyncadd [#allocation3], %s20
      %s22 = sshll.u32 [#allocation2], 4
      %s23 = int_to_ptr.vmem [resolvable:$true] %s22
      %28 = dma.hbm_to_vmem [thread:$0]  %s0, 256, %s23, [#allocation3], 128, 128, 8
    $region5: #{tpu_custom_call.1} parent=1 // pred_fallthru
      _
    // Predicated region
    $region6: #{tpu_custom_call.1} parent=1 // pred_check
      _
    $region7: #{tpu_custom_call.1} parent=1 // pred_check_branch
      %30 = sbr.rel (0) target = $region9
    $region8: #{tpu_custom_call.1} parent=1 // pred_region
      %s32 = ssub.s32 256, 256
      %33 = vsyncadd [#allocation6], %s32
      %s34 = sshll.u32 [#allocation5], 4
      %s35 = int_to_ptr.vmem [resolvable:$true] %s34
      %40 = dma.hbm_to_vmem [thread:$0]  %s1, 256, %s35, [#allocation6], 128, 128, 8
    $region9: #{tpu_custom_call.1} parent=1 // pred_fallthru
      _
    // Predicated region
    $region10: #{tpu_custom_call.1} parent=1 // pred_check
      _
    $region11: #{tpu_custom_call.1} parent=1 // pred_check_branch
      %42 = sbr.rel (0) target = $region13
    $region12: #{tpu_custom_call.1} parent=1 // pred_region
      %s44 = ssub.s32 512, 512
      %45 = vsyncadd [#allocation6], %s44
      %s46 = sshll.u32 [#allocation7], 4
      %s47 = int_to_ptr.vmem [resolvable:$true] %s46
      %52 = dma.hbm_to_vmem [thread:$0]  %s2, 512, %s47, [#allocation6], 128, 128, 8
    $region13: #{tpu_custom_call.1} parent=1 // pred_fallthru
      _
    // Predicated region
    $region14: #{tpu_custom_call.1} parent=1 // pred_check
      _
    $region15: #{tpu_custom_call.1} parent=1 // pred_check_branch
      %54 = sbr.rel (0) target = $region17
    $region16: #{tpu_custom_call.1} parent=1 // pred_region
      %s56 = ssub.s32 512, 512
      %57 = vsyncadd [#allocation9], %s56
      %s58 = sshll.u32 [#allocation8], 4
      %s59 = int_to_ptr.vmem [resolvable:$true] %s58
      %64 = dma.hbm_to_vmem [thread:$0]  %s3, 512, %s59, [#allocation9], 128, 128, 8
    $region17: #{tpu_custom_call.1} parent=1 // pred_fallthru
      _
    // Predicated region
    $region18: #{tpu_custom_call.1} parent=1 // pred_check
      _
    $region19: #{tpu_custom_call.1} parent=1 // pred_check_branch
      %66 = sbr.rel (0) target = $region21
    $region20: #{tpu_custom_call.1} parent=1 // pred_region
      %s68 = ssub.s32 512, 512
      %69 = vsyncadd [#allocation9], %s68
      %s70 = sshll.u32 [#allocation10], 4
      %s71 = int_to_ptr.vmem [resolvable:$true] %s70
      %76 = dma.hbm_to_vmem [thread:$0]  %s4, 512, %s71, [#allocation9], 128, 128, 8
    $region21: #{tpu_custom_call.1} parent=1 // pred_fallthru
      _
    // Predicated region
    $region22: #{tpu_custom_call.1} parent=1 // pred_check
      _
    $region23: #{tpu_custom_call.1} parent=1 // pred_check_branch
      %78 = sbr.rel (0) target = $region25
    $region24: #{tpu_custom_call.1} parent=1 // pred_region
      %s80 = ssub.s32 512, 512
      %81 = vsyncadd [#allocation12], %s80
      %s82 = sshll.u32 [#allocation11], 4
      %s83 = int_to_ptr.vmem [resolvable:$true] %s82
      %88 = dma.hbm_to_vmem [thread:$0]  %s5, 512, %s83, [#allocation12], 128, 128, 8
    $region25: #{tpu_custom_call.1} parent=1 // pred_fallthru
      _
    // Predicated region
    $region26: #{tpu_custom_call.1} parent=1 // pred_check
      _
    $region27: #{tpu_custom_call.1} parent=1 // pred_check_branch
      %90 = sbr.rel (0) target = $region29
    $region28: #{tpu_custom_call.1} parent=1 // pred_region
      _
    $region29: #{tpu_custom_call.1} parent=1 // pred_fallthru
      _
    // Predicated region
    $region30: #{tpu_custom_call.1} parent=1 // pred_check
      _
    $region31: #{tpu_custom_call.1} parent=1 // pred_check_branch
      %92 = sbr.rel (0) target = $region33
    $region32: #{tpu_custom_call.1} parent=1 // pred_region
      %93 = dma.done [#allocation3], 256
    $region33: #{tpu_custom_call.1} parent=1 // pred_fallthru
      _
    // Predicated region
    $region34: #{tpu_custom_call.1} parent=1 // pred_check
      _
    $region35: #{tpu_custom_call.1} parent=1 // pred_check_branch
      %95 = sbr.rel (0) target = $region37
    $region36: #{tpu_custom_call.1} parent=1 // pred_region
      %96 = dma.done [#allocation6], 256
    $region37: #{tpu_custom_call.1} parent=1 // pred_fallthru
      _
    // Predicated region
    $region38: #{tpu_custom_call.1} parent=1 // pred_check
      _
    $region39: #{tpu_custom_call.1} parent=1 // pred_check_branch
      %98 = sbr.rel (0) target = $region41
    $region40: #{tpu_custom_call.1} parent=1 // pred_region
      %99 = dma.done [#allocation6], 512
    $region41: #{tpu_custom_call.1} parent=1 // pred_fallthru
      _
    // Predicated region
    $region42: #{tpu_custom_call.1} parent=1 // pred_check
      _
    $region43: #{tpu_custom_call.1} parent=1 // pred_check_branch
      %101 = sbr.rel (0) target = $region45
    $region44: #{tpu_custom_call.1} parent=1 // pred_region
      %102 = dma.done [#allocation9], 512
    $region45: #{tpu_custom_call.1} parent=1 // pred_fallthru
      _
    // Predicated region
    $region46: #{tpu_custom_call.1} parent=1 // pred_check
      _
    $region47: #{tpu_custom_call.1} parent=1 // pred_check_branch
      %104 = sbr.rel (0) target = $region49
    $region48: #{tpu_custom_call.1} parent=1 // pred_region
      %105 = dma.done [#allocation9], 512
    $region49: #{tpu_custom_call.1} parent=1 // pred_fallthru
      _
    // Predicated region
    $region50: #{tpu_custom_call.1} parent=1 // pred_check
      _
    $region51: #{tpu_custom_call.1} parent=1 // pred_check_branch
      %107 = sbr.rel (0) target = $region53
    $region52: #{tpu_custom_call.1} parent=1 // pred_region
      %108 = dma.done [#allocation12], 512
    $region53: #{tpu_custom_call.1} parent=1 // pred_fallthru
      _
    %v110 = vld [vmem:[#allocation2] sm:$0xff]
    %v111 = vld [vmem:[#allocation2 + $0x8] sm:$0xff]
    %v112 = vpack.c.bf16 %v111, %v110
    %v113 = vld [vmem:[#allocation5] sm:$0xff]
    %v114 = vld [vmem:[#allocation5 + $0x8] sm:$0xff]
    %v115 = vpack.c.bf16 %v114, %v113
    %v116 = vld [vmem:[#allocation7] sm:$0xff]
    %v117 = vld [vmem:[#allocation7 + $0x8] sm:$0xff]
    %v118 = vld [vmem:[#allocation7 + $0x10] sm:$0xff]
    %v119 = vld [vmem:[#allocation7 + $0x18] sm:$0xff]
    %v120 = vpack.c.bf16 %v117, %v116
    %v121 = vpack.c.bf16 %v119, %v118
    %v122 = vld [vmem:[#allocation8] sm:$0xff]
    %v123 = vld [vmem:[#allocation8 + $0x8] sm:$0xff]
    %v124 = vld [vmem:[#allocation8 + $0x10] sm:$0xff]
    %v125 = vld [vmem:[#allocation8 + $0x18] sm:$0xff]
    %v126 = vpack.c.bf16 %v123, %v122
    %v127 = vpack.c.bf16 %v125, %v124
    %v128 = vld [vmem:[#allocation10] sm:$0xff]
    %v129 = vld [vmem:[#allocation10 + $0x8] sm:$0xff]
    %v130 = vld [vmem:[#allocation10 + $0x10] sm:$0xff]
    %v131 = vld [vmem:[#allocation10 + $0x18] sm:$0xff]
    %v132 = vpack.c.bf16 %v129, %v128
    %v133 = vpack.c.bf16 %v131, %v130
    %vm134 = vcmask 261120
    %v136 = vsel %vm134, %v112, 0
    %138 = vmatprep.subr.bf16.mxu0 0
    %139 = vmatpush1.bf16.msra.mxu0 %v120
    %140 = vmatprep.subr.bf16.mxu0 0
    %141 = vmatpush1.bf16.msra.mxu0 %v121
    %142 = vmatprep.subr.bf16.mxu0 0
    %143 = vmatpush1.bf16.msra.mxu0 0
    %144 = vmatprep.subr.bf16.mxu0 0
    %145 = vmatpush1.bf16.msra.mxu0 0
    %146 = vmatprep.subr.bf16.mxu0 0
    %147 = vmatpush1.bf16.msra.mxu0 0
    %148 = vmatprep.subr.bf16.mxu0 0
    %149 = vmatpush1.bf16.msra.mxu0 0
    %150 = vmatprep.subr.bf16.mxu0 0
    %151 = vmatpush1.bf16.msra.mxu0 0
    %152 = vmatprep.subr.bf16.mxu0 0
    %153 = vmatpush1.bf16.msra.mxu0 0
    %154 = vmatprep.subr.bf16.mxu0 0
    %155 = vmatpush1.bf16.msra.mxu0 0
    %156 = vmatprep.subr.bf16.mxu0 0
    %157 = vmatpush1.bf16.msra.mxu0 0
    %158 = vmatprep.subr.bf16.mxu0 0
    %159 = vmatpush1.bf16.msra.mxu0 0
    %160 = vmatprep.subr.bf16.mxu0 0
    %161 = vmatpush1.bf16.msra.mxu0 0
    %162 = vmatprep.subr.bf16.mxu0 0
    %163 = vmatpush1.bf16.msra.mxu0 0
    %164 = vmatprep.subr.bf16.mxu0 0
    %165 = vmatpush1.bf16.msra.mxu0 0
    %166 = vmatprep.subr.bf16.mxu0 0
    %167 = vmatpush1.bf16.msra.mxu0 0
    %168 = vmatprep.subr.bf16.mxu0 0
    %169 = vmatpush1.bf16.msra.mxu0 0
    %170 = vmatprep.mubr.bf16.mxu0 0
    %171 = vmatmul.mubr.bf16.gmra.mrb[0].mxu0 %v136
    %v172 = vpop.f32.mrb[0].mxu0
    %v173 = vadd.f32 0.0, %v172
    %v174 = vpop.f32.mrb[0].mxu0
    %v175 = vpop.f32.mrb[0].mxu0
    %v176 = vadd.f32 0.0, %v175
    %v177 = vpop.f32.mrb[0].mxu0
    %178 = vdwg.mxu0
    %v180 = vsel %vm134, %v115, 0
    %182 = vmatprep.subr.bf16.mxu0 0
    %183 = vmatpush1.bf16.msra.mxu0 %v126
    %184 = vmatprep.subr.bf16.mxu0 0
    %185 = vmatpush1.bf16.msra.mxu0 %v127
    %186 = vmatprep.subr.bf16.mxu0 0
    %187 = vmatpush1.bf16.msra.mxu0 0
    %188 = vmatprep.subr.bf16.mxu0 0
    %189 = vmatpush1.bf16.msra.mxu0 0
    %190 = vmatprep.subr.bf16.mxu0 0
    %191 = vmatpush1.bf16.msra.mxu0 0
    %192 = vmatprep.subr.bf16.mxu0 0
    %193 = vmatpush1.bf16.msra.mxu0 0
    %194 = vmatprep.subr.bf16.mxu0 0
    %195 = vmatpush1.bf16.msra.mxu0 0
    %196 = vmatprep.subr.bf16.mxu0 0
    %197 = vmatpush1.bf16.msra.mxu0 0
    %198 = vmatprep.subr.bf16.mxu0 0
    %199 = vmatpush1.bf16.msra.mxu0 0
    %200 = vmatprep.subr.bf16.mxu0 0
    %201 = vmatpush1.bf16.msra.mxu0 0
    %202 = vmatprep.subr.bf16.mxu0 0
    %203 = vmatpush1.bf16.msra.mxu0 0
    %204 = vmatprep.subr.bf16.mxu0 0
    %205 = vmatpush1.bf16.msra.mxu0 0
    %206 = vmatprep.subr.bf16.mxu0 0
    %207 = vmatpush1.bf16.msra.mxu0 0
    %208 = vmatprep.subr.bf16.mxu0 0
    %209 = vmatpush1.bf16.msra.mxu0 0
    %210 = vmatprep.subr.bf16.mxu0 0
    %211 = vmatpush1.bf16.msra.mxu0 0
    %212 = vmatprep.subr.bf16.mxu0 0
    %213 = vmatpush1.bf16.msra.mxu0 0
    %214 = vmatprep.mubr.bf16.mxu0 0
    %215 = vmatmul.mubr.bf16.gmra.mrb[0].mxu0 %v180
    %v216 = vpop.f32.mrb[0].mxu0
    %v217 = vadd.f32 0.0, %v216
    %v218 = vpop.f32.mrb[0].mxu0
    %v219 = vpop.f32.mrb[0].mxu0
    %v220 = vadd.f32 0.0, %v219
    %v221 = vpop.f32.mrb[0].mxu0
    %222 = vdwg.mxu0
    %223 = vmatprep.subr.bf16.mxu0 0
    %224 = vmatpush1.bf16.msra.mxu0 %v132
    %225 = vmatprep.subr.bf16.mxu0 0
    %226 = vmatpush1.bf16.msra.mxu0 %v133
    %227 = vmatprep.subr.bf16.mxu0 0
    %228 = vmatpush1.bf16.msra.mxu0 0
    %229 = vmatprep.subr.bf16.mxu0 0
    %230 = vmatpush1.bf16.msra.mxu0 0
    %231 = vmatprep.subr.bf16.mxu0 0
    %232 = vmatpush1.bf16.msra.mxu0 0
    %233 = vmatprep.subr.bf16.mxu0 0
    %234 = vmatpush1.bf16.msra.mxu0 0
    %235 = vmatprep.subr.bf16.mxu0 0
    %236 = vmatpush1.bf16.msra.mxu0 0
    %237 = vmatprep.subr.bf16.mxu0 0
    %238 = vmatpush1.bf16.msra.mxu0 0
    %239 = vmatprep.subr.bf16.mxu0 0
    %240 = vmatpush1.bf16.msra.mxu0 0
    %241 = vmatprep.subr.bf16.mxu0 0
    %242 = vmatpush1.bf16.msra.mxu0 0
    %243 = vmatprep.subr.bf16.mxu0 0
    %244 = vmatpush1.bf16.msra.mxu0 0
    %245 = vmatprep.subr.bf16.mxu0 0
    %246 = vmatpush1.bf16.msra.mxu0 0
    %247 = vmatprep.subr.bf16.mxu0 0
    %248 = vmatpush1.bf16.msra.mxu0 0
    %249 = vmatprep.subr.bf16.mxu0 0
    %250 = vmatpush1.bf16.msra.mxu0 0
    %251 = vmatprep.subr.bf16.mxu0 0
    %252 = vmatpush1.bf16.msra.mxu0 0
    %253 = vmatprep.subr.bf16.mxu0 0
    %254 = vmatpush1.bf16.msra.mxu0 0
    %255 = vmatprep.mubr.bf16.mxu0 0
    %256 = vmatmul.mubr.bf16.gmra.mrb[0].mxu0 %v180
    %v257 = vpop.f32.mrb[0].mxu0
    %v258 = vadd.f32 0.0, %v257
    %v259 = vpop.f32.mrb[0].mxu0
    %v260 = vpop.f32.mrb[0].mxu0
    %v261 = vadd.f32 0.0, %v260
    %v262 = vpop.f32.mrb[0].mxu0
    %263 = vdwg.mxu0
    %v264 = vpack.c.bf16 %v173, %v173
    %v265 = vpack.c.bf16 %v176, %v176
    %v266 = vpack.c.bf16 %v217, %v217
    %v267 = vpack.c.bf16 %v220, %v220
    %v268 = vpack.c.bf16 %v258, %v258
    %v269 = vpack.c.bf16 %v261, %v261
    %vm270 = vcmask 64512
    %v272 = vsel %vm270, %v264, 0
    %v275 = vsel %vm270, %v266, 0
    %277 = vmatprep.subr.bf16.mxu0 0
    %278 = vmatpush1.bf16.xpose.msra.mxu0 %v275
    %279 = vmatprep.subr.bf16.mxu0 0
    %280 = vmatpush1.bf16.xpose.msra.mxu0 0
    %281 = vmatprep.subr.bf16.mxu0 0
    %282 = vmatpush1.bf16.xpose.msra.mxu0 0
    %283 = vmatprep.subr.bf16.mxu0 0
    %284 = vmatpush1.bf16.xpose.msra.mxu0 0
    %285 = vmatprep.subr.bf16.mxu0 0
    %286 = vmatpush1.bf16.xpose.msra.mxu0 0
    %287 = vmatprep.subr.bf16.mxu0 0
    %288 = vmatpush1.bf16.xpose.msra.mxu0 0
    %289 = vmatprep.subr.bf16.mxu0 0
    %290 = vmatpush1.bf16.xpose.msra.mxu0 0
    %291 = vmatprep.subr.bf16.mxu0 0
    %292 = vmatpush1.bf16.xpose.msra.mxu0 0
    %293 = vmatprep.subr.bf16.mxu0 0
    %294 = vmatpush1.bf16.xpose.msra.mxu0 0
    %295 = vmatprep.subr.bf16.mxu0 0
    %296 = vmatpush1.bf16.xpose.msra.mxu0 0
    %297 = vmatprep.subr.bf16.mxu0 0
    %298 = vmatpush1.bf16.xpose.msra.mxu0 0
    %299 = vmatprep.subr.bf16.mxu0 0
    %300 = vmatpush1.bf16.xpose.msra.mxu0 0
    %301 = vmatprep.subr.bf16.mxu0 0
    %302 = vmatpush1.bf16.xpose.msra.mxu0 0
    %303 = vmatprep.subr.bf16.mxu0 0
    %304 = vmatpush1.bf16.xpose.msra.mxu0 0
    %305 = vmatprep.subr.bf16.mxu0 0
    %306 = vmatpush1.bf16.xpose.msra.mxu0 0
    %307 = vmatprep.subr.bf16.mxu0 0
    %308 = vmatpush1.bf16.xpose.msra.mxu0 0
    %309 = vmatprep.mubr.bf16.mxu0 0
    %310 = vmatmul.mubr.bf16.gmra.mrb[0].mxu0 %v272
    %v311 = vpop.f32.mrb[0].mxu0
    %v312 = vadd.f32 0.0, %v311
    %v313 = vpop.f32.mrb[0].mxu0
    %v314 = vpop.f32.mrb[0].mxu0
    %v315 = vpop.f32.mrb[0].mxu0
    %316 = vdwg.mxu0
    %v318 = vsel %vm270, %v265, 0
    %v321 = vsel %vm270, %v267, 0
    %323 = vmatprep.subr.bf16.mxu0 0
    %324 = vmatpush1.bf16.xpose.msra.mxu0 %v321
    %325 = vmatprep.subr.bf16.mxu0 0
    %326 = vmatpush1.bf16.xpose.msra.mxu0 0
    %327 = vmatprep.subr.bf16.mxu0 0
    %328 = vmatpush1.bf16.xpose.msra.mxu0 0
    %329 = vmatprep.subr.bf16.mxu0 0
    %330 = vmatpush1.bf16.xpose.msra.mxu0 0
    %331 = vmatprep.subr.bf16.mxu0 0
    %332 = vmatpush1.bf16.xpose.msra.mxu0 0
    %333 = vmatprep.subr.bf16.mxu0 0
    %334 = vmatpush1.bf16.xpose.msra.mxu0 0
    %335 = vmatprep.subr.bf16.mxu0 0
    %336 = vmatpush1.bf16.xpose.msra.mxu0 0
    %337 = vmatprep.subr.bf16.mxu0 0
    %338 = vmatpush1.bf16.xpose.msra.mxu0 0
    %339 = vmatprep.subr.bf16.mxu0 0
    %340 = vmatpush1.bf16.xpose.msra.mxu0 0
    %341 = vmatprep.subr.bf16.mxu0 0
    %342 = vmatpush1.bf16.xpose.msra.mxu0 0
    %343 = vmatprep.subr.bf16.mxu0 0
    %344 = vmatpush1.bf16.xpose.msra.mxu0 0
    %345 = vmatprep.subr.bf16.mxu0 0
    %346 = vmatpush1.bf16.xpose.msra.mxu0 0
    %347 = vmatprep.subr.bf16.mxu0 0
    %348 = vmatpush1.bf16.xpose.msra.mxu0 0
    %349 = vmatprep.subr.bf16.mxu0 0
    %350 = vmatpush1.bf16.xpose.msra.mxu0 0
    %351 = vmatprep.subr.bf16.mxu0 0
    %352 = vmatpush1.bf16.xpose.msra.mxu0 0
    %353 = vmatprep.subr.bf16.mxu0 0
    %354 = vmatpush1.bf16.xpose.msra.mxu0 0
    %355 = vmatprep.mubr.bf16.mxu0 0
    %356 = vmatmul.mubr.bf16.gmra.mrb[0].mxu0 %v318
    %v357 = vpop.f32.mrb[0].mxu0
    %v358 = vadd.f32 0.0, %v357
    %v359 = vpop.f32.mrb[0].mxu0
    %v360 = vpop.f32.mrb[0].mxu0
    %v361 = vpop.f32.mrb[0].mxu0
    %362 = vdwg.mxu0
    %v363 = vsel %vm270, %v312, -inf
    %364 = vmax.xlane.f32.xlu0 %v363
    %v365 = vpop.xlane.xlu0 %364
    %v366 = vsel %vm270, %v358, -inf
    %367 = vmax.xlane.f32.xlu0 %v366
    %v368 = vpop.xlane.xlu0 %367
    %v369 = vsub.f32 %v312, %v365
    %v370 = vsub.f32 %v358, %v368
    %v371 = vmul.f32 %v369, 1.442695
    %v372 = vpow.pop %v371
    %v373 = vmul.f32 %v370, 1.442695
    %v374 = vpow.pop %v373
    %v375 = vsel %vm270, %v372, 0.0
    %376 = vadd.xlane.f32.xlu0 %v375
    %v377 = vpop.xlane.xlu0 %376
    %v378 = vsel %vm270, %v374, 0.0
    %379 = vadd.xlane.f32.xlu0 %v378
    %v380 = vpop.xlane.xlu0 %379
    %v381 = vrcp.pop %v377
    %v382 = vrcp.pop %v380
    %v383 = vmul.f32 %v372, %v381
    %v384 = vmul.f32 %v374, %v382
    %v385 = vpack.c.bf16 %v383, %v383
    %v386 = vpack.c.bf16 %v384, %v384
    %v388 = vsel %vm270, %v385, 0
    %vm390 = vcmask 1043456
    %v392 = vsel %vm390, %v268, 0
    %394 = vmatprep.subr.bf16.mxu0 0
    %395 = vmatpush1.bf16.msra.mxu0 %v392
    %396 = vmatprep.subr.bf16.mxu0 0
    %397 = vmatpush1.bf16.msra.mxu0 0
    %398 = vmatprep.subr.bf16.mxu0 0
    %399 = vmatpush1.bf16.msra.mxu0 0
    %400 = vmatprep.subr.bf16.mxu0 0
    %401 = vmatpush1.bf16.msra.mxu0 0
    %402 = vmatprep.subr.bf16.mxu0 0
    %403 = vmatpush1.bf16.msra.mxu0 0
    %404 = vmatprep.subr.bf16.mxu0 0
    %405 = vmatpush1.bf16.msra.mxu0 0
    %406 = vmatprep.subr.bf16.mxu0 0
    %407 = vmatpush1.bf16.msra.mxu0 0
    %408 = vmatprep.subr.bf16.mxu0 0
    %409 = vmatpush1.bf16.msra.mxu0 0
    %410 = vmatprep.subr.bf16.mxu0 0
    %411 = vmatpush1.bf16.msra.mxu0 0
    %412 = vmatprep.subr.bf16.mxu0 0
    %413 = vmatpush1.bf16.msra.mxu0 0
    %414 = vmatprep.subr.bf16.mxu0 0
    %415 = vmatpush1.bf16.msra.mxu0 0
    %416 = vmatprep.subr.bf16.mxu0 0
    %417 = vmatpush1.bf16.msra.mxu0 0
    %418 = vmatprep.subr.bf16.mxu0 0
    %419 = vmatpush1.bf16.msra.mxu0 0
    %420 = vmatprep.subr.bf16.mxu0 0
    %421 = vmatpush1.bf16.msra.mxu0 0
    %422 = vmatprep.subr.bf16.mxu0 0
    %423 = vmatpush1.bf16.msra.mxu0 0
    %424 = vmatprep.subr.bf16.mxu0 0
    %425 = vmatpush1.bf16.msra.mxu0 0
    %426 = vmatprep.mubr.bf16.mxu0 0
    %427 = vmatmul.mubr.bf16.gmra.mrb[0].mxu0 %v388
    %v428 = vpop.f32.mrb[0].mxu0
    %v429 = vadd.f32 0.0, %v428
    %v430 = vpop.f32.mrb[0].mxu0
    %v431 = vpop.f32.mrb[0].mxu0
    %v432 = vpop.f32.mrb[0].mxu0
    %433 = vdwg.mxu0
    %v435 = vsel %vm270, %v386, 0
    %v438 = vsel %vm390, %v269, 0
    %440 = vmatprep.subr.bf16.mxu0 0
    %441 = vmatpush1.bf16.msra.mxu0 %v438
    %442 = vmatprep.subr.bf16.mxu0 0
    %443 = vmatpush1.bf16.msra.mxu0 0
    %444 = vmatprep.subr.bf16.mxu0 0
    %445 = vmatpush1.bf16.msra.mxu0 0
    %446 = vmatprep.subr.bf16.mxu0 0
    %447 = vmatpush1.bf16.msra.mxu0 0
    %448 = vmatprep.subr.bf16.mxu0 0
    %449 = vmatpush1.bf16.msra.mxu0 0
    %450 = vmatprep.subr.bf16.mxu0 0
    %451 = vmatpush1.bf16.msra.mxu0 0
    %452 = vmatprep.subr.bf16.mxu0 0
    %453 = vmatpush1.bf16.msra.mxu0 0
    %454 = vmatprep.subr.bf16.mxu0 0
    %455 = vmatpush1.bf16.msra.mxu0 0
    %456 = vmatprep.subr.bf16.mxu0 0
    %457 = vmatpush1.bf16.msra.mxu0 0
    %458 = vmatprep.subr.bf16.mxu0 0
    %459 = vmatpush1.bf16.msra.mxu0 0
    %460 = vmatprep.subr.bf16.mxu0 0
    %461 = vmatpush1.bf16.msra.mxu0 0
    %462 = vmatprep.subr.bf16.mxu0 0
    %463 = vmatpush1.bf16.msra.mxu0 0
    %464 = vmatprep.subr.bf16.mxu0 0
    %465 = vmatpush1.bf16.msra.mxu0 0
    %466 = vmatprep.subr.bf16.mxu0 0
    %467 = vmatpush1.bf16.msra.mxu0 0
    %468 = vmatprep.subr.bf16.mxu0 0
    %469 = vmatpush1.bf16.msra.mxu0 0
    %470 = vmatprep.subr.bf16.mxu0 0
    %471 = vmatpush1.bf16.msra.mxu0 0
    %472 = vmatprep.mubr.bf16.mxu0 0
    %473 = vmatmul.mubr.bf16.gmra.mrb[0].mxu0 %v435
    %v474 = vpop.f32.mrb[0].mxu0
    %v475 = vadd.f32 0.0, %v474
    %v476 = vpop.f32.mrb[0].mxu0
    %v477 = vpop.f32.mrb[0].mxu0
    %v478 = vpop.f32.mrb[0].mxu0
    %479 = vdwg.mxu0
    %v480 = vpack.c.bf16 %v475, %v429
    %v481 = vld [vmem:[#allocation11] sm:$0xff]
    %v482 = vpack.c.bf16 %v481, %v481
    %484 = vrot.lane.b32.xlu0 %v264, 120
    %v485 = vpop.permute.xlu0 %484
    %487 = vrot.lane.b32.xlu0 %v266, 120
    %v488 = vpop.permute.xlu0 %487
    %v490 = vsel %vm270, %v485, 0
    %v493 = vsel %vm270, %v488, 0
    %495 = vmatprep.subr.bf16.mxu0 0
    %496 = vmatpush1.bf16.xpose.msra.mxu0 %v493
    %497 = vmatprep.subr.bf16.mxu0 0
    %498 = vmatpush1.bf16.xpose.msra.mxu0 0
    %499 = vmatprep.subr.bf16.mxu0 0
    %500 = vmatpush1.bf16.xpose.msra.mxu0 0
    %501 = vmatprep.subr.bf16.mxu0 0
    %502 = vmatpush1.bf16.xpose.msra.mxu0 0
    %503 = vmatprep.subr.bf16.mxu0 0
    %504 = vmatpush1.bf16.xpose.msra.mxu0 0
    %505 = vmatprep.subr.bf16.mxu0 0
    %506 = vmatpush1.bf16.xpose.msra.mxu0 0
    %507 = vmatprep.subr.bf16.mxu0 0
    %508 = vmatpush1.bf16.xpose.msra.mxu0 0
    %509 = vmatprep.subr.bf16.mxu0 0
    %510 = vmatpush1.bf16.xpose.msra.mxu0 0
    %511 = vmatprep.subr.bf16.mxu0 0
    %512 = vmatpush1.bf16.xpose.msra.mxu0 0
    %513 = vmatprep.subr.bf16.mxu0 0
    %514 = vmatpush1.bf16.xpose.msra.mxu0 0
    %515 = vmatprep.subr.bf16.mxu0 0
    %516 = vmatpush1.bf16.xpose.msra.mxu0 0
    %517 = vmatprep.subr.bf16.mxu0 0
    %518 = vmatpush1.bf16.xpose.msra.mxu0 0
    %519 = vmatprep.subr.bf16.mxu0 0
    %520 = vmatpush1.bf16.xpose.msra.mxu0 0
    %521 = vmatprep.subr.bf16.mxu0 0
    %522 = vmatpush1.bf16.xpose.msra.mxu0 0
    %523 = vmatprep.subr.bf16.mxu0 0
    %524 = vmatpush1.bf16.xpose.msra.mxu0 0
    %525 = vmatprep.subr.bf16.mxu0 0
    %526 = vmatpush1.bf16.xpose.msra.mxu0 0
    %527 = vmatprep.mubr.bf16.mxu0 0
    %528 = vmatmul.mubr.bf16.gmra.mrb[0].mxu0 %v490
    %v529 = vpop.f32.mrb[0].mxu0
    %v530 = vadd.f32 0.0, %v529
    %v531 = vpop.f32.mrb[0].mxu0
    %v532 = vpop.f32.mrb[0].mxu0
    %v533 = vpop.f32.mrb[0].mxu0
    %534 = vdwg.mxu0
    %536 = vrot.lane.b32.xlu0 %v265, 120
    %v537 = vpop.permute.xlu0 %536
    %539 = vrot.lane.b32.xlu0 %v267, 120
    %v540 = vpop.permute.xlu0 %539
    %v542 = vsel %vm270, %v537, 0
    %v545 = vsel %vm270, %v540, 0
    %547 = vmatprep.subr.bf16.mxu0 0
    %548 = vmatpush1.bf16.xpose.msra.mxu0 %v545
    %549 = vmatprep.subr.bf16.mxu0 0
    %550 = vmatpush1.bf16.xpose.msra.mxu0 0
    %551 = vmatprep.subr.bf16.mxu0 0
    %552 = vmatpush1.bf16.xpose.msra.mxu0 0
    %553 = vmatprep.subr.bf16.mxu0 0
    %554 = vmatpush1.bf16.xpose.msra.mxu0 0
    %555 = vmatprep.subr.bf16.mxu0 0
    %556 = vmatpush1.bf16.xpose.msra.mxu0 0
    %557 = vmatprep.subr.bf16.mxu0 0
    %558 = vmatpush1.bf16.xpose.msra.mxu0 0
    %559 = vmatprep.subr.bf16.mxu0 0
    %560 = vmatpush1.bf16.xpose.msra.mxu0 0
    %561 = vmatprep.subr.bf16.mxu0 0
    %562 = vmatpush1.bf16.xpose.msra.mxu0 0
    %563 = vmatprep.subr.bf16.mxu0 0
    %564 = vmatpush1.bf16.xpose.msra.mxu0 0
    %565 = vmatprep.subr.bf16.mxu0 0
    %566 = vmatpush1.bf16.xpose.msra.mxu0 0
    %567 = vmatprep.subr.bf16.mxu0 0
    %568 = vmatpush1.bf16.xpose.msra.mxu0 0
    %569 = vmatprep.subr.bf16.mxu0 0
    %570 = vmatpush1.bf16.xpose.msra.mxu0 0
    %571 = vmatprep.subr.bf16.mxu0 0
    %572 = vmatpush1.bf16.xpose.msra.mxu0 0
    %573 = vmatprep.subr.bf16.mxu0 0
    %574 = vmatpush1.bf16.xpose.msra.mxu0 0
    %575 = vmatprep.subr.bf16.mxu0 0
    %576 = vmatpush1.bf16.xpose.msra.mxu0 0
    %577 = vmatprep.subr.bf16.mxu0 0
    %578 = vmatpush1.bf16.xpose.msra.mxu0 0
    %579 = vmatprep.mubr.bf16.mxu0 0
    %580 = vmatmul.mubr.bf16.gmra.mrb[0].mxu0 %v542
    %v581 = vpop.f32.mrb[0].mxu0
    %v582 = vadd.f32 0.0, %v581
    %v583 = vpop.f32.mrb[0].mxu0
    %v584 = vpop.f32.mrb[0].mxu0
    %v585 = vpop.f32.mrb[0].mxu0
    %586 = vdwg.mxu0
    %v587 = vsel %vm270, %v530, -inf
    %588 = vmax.xlane.f32.xlu0 %v587
    %v589 = vpop.xlane.xlu0 %588
    %v590 = vsel %vm270, %v582, -inf
    %591 = vmax.xlane.f32.xlu0 %v590
    %v592 = vpop.xlane.xlu0 %591
    %v593 = vsub.f32 %v530, %v589
    %v594 = vsub.f32 %v582, %v592
    %v595 = vmul.f32 %v593, 1.442695
    %v596 = vpow.pop %v595
    %v597 = vmul.f32 %v594, 1.442695
    %v598 = vpow.pop %v597
    %v599 = vsel %vm270, %v596, 0.0
    %600 = vadd.xlane.f32.xlu0 %v599
    %v601 = vpop.xlane.xlu0 %600
    %v602 = vsel %vm270, %v598, 0.0
    %603 = vadd.xlane.f32.xlu0 %v602
    %v604 = vpop.xlane.xlu0 %603
    %v605 = vrcp.pop %v601
    %v606 = vrcp.pop %v604
    %v607 = vmul.f32 %v596, %v605
    %v608 = vmul.f32 %v598, %v606
    %v609 = vpack.c.bf16 %v607, %v607
    %v610 = vpack.c.bf16 %v608, %v608
    %612 = vrot.lane.b32.xlu0 %v268, 120
    %v613 = vpop.permute.xlu0 %612
    %v615 = vsel %vm270, %v609, 0
    %v618 = vsel %vm390, %v613, 0
    %620 = vmatprep.subr.bf16.mxu0 0
    %621 = vmatpush1.bf16.msra.mxu0 %v618
    %622 = vmatprep.subr.bf16.mxu0 0
    %623 = vmatpush1.bf16.msra.mxu0 0
    %624 = vmatprep.subr.bf16.mxu0 0
    %625 = vmatpush1.bf16.msra.mxu0 0
    %626 = vmatprep.subr.bf16.mxu0 0
    %627 = vmatpush1.bf16.msra.mxu0 0
    %628 = vmatprep.subr.bf16.mxu0 0
    %629 = vmatpush1.bf16.msra.mxu0 0
    %630 = vmatprep.subr.bf16.mxu0 0
    %631 = vmatpush1.bf16.msra.mxu0 0
    %632 = vmatprep.subr.bf16.mxu0 0
    %633 = vmatpush1.bf16.msra.mxu0 0
    %634 = vmatprep.subr.bf16.mxu0 0
    %635 = vmatpush1.bf16.msra.mxu0 0
    %636 = vmatprep.subr.bf16.mxu0 0
    %637 = vmatpush1.bf16.msra.mxu0 0
    %638 = vmatprep.subr.bf16.mxu0 0
    %639 = vmatpush1.bf16.msra.mxu0 0
    %640 = vmatprep.subr.bf16.mxu0 0
    %641 = vmatpush1.bf16.msra.mxu0 0
    %642 = vmatprep.subr.bf16.mxu0 0
    %643 = vmatpush1.bf16.msra.mxu0 0
    %644 = vmatprep.subr.bf16.mxu0 0
    %645 = vmatpush1.bf16.msra.mxu0 0
    %646 = vmatprep.subr.bf16.mxu0 0
    %647 = vmatpush1.bf16.msra.mxu0 0
    %648 = vmatprep.subr.bf16.mxu0 0
    %649 = vmatpush1.bf16.msra.mxu0 0
    %650 = vmatprep.subr.bf16.mxu0 0
    %651 = vmatpush1.bf16.msra.mxu0 0
    %652 = vmatprep.mubr.bf16.mxu0 0
    %653 = vmatmul.mubr.bf16.gmra.mrb[0].mxu0 %v615
    %v654 = vpop.f32.mrb[0].mxu0
    %v655 = vadd.f32 0.0, %v654
    %v656 = vpop.f32.mrb[0].mxu0
    %v657 = vpop.f32.mrb[0].mxu0
    %v658 = vpop.f32.mrb[0].mxu0
    %659 = vdwg.mxu0
    %661 = vrot.lane.b32.xlu0 %v269, 120
    %v662 = vpop.permute.xlu0 %661
    %v664 = vsel %vm270, %v610, 0
    %v667 = vsel %vm390, %v662, 0
    %669 = vmatprep.subr.bf16.mxu0 0
    %670 = vmatpush1.bf16.msra.mxu0 %v667
    %671 = vmatprep.subr.bf16.mxu0 0
    %672 = vmatpush1.bf16.msra.mxu0 0
    %673 = vmatprep.subr.bf16.mxu0 0
    %674 = vmatpush1.bf16.msra.mxu0 0
    %675 = vmatprep.subr.bf16.mxu0 0
    %676 = vmatpush1.bf16.msra.mxu0 0
    %677 = vmatprep.subr.bf16.mxu0 0
    %678 = vmatpush1.bf16.msra.mxu0 0
    %679 = vmatprep.subr.bf16.mxu0 0
    %680 = vmatpush1.bf16.msra.mxu0 0
    %681 = vmatprep.subr.bf16.mxu0 0
    %682 = vmatpush1.bf16.msra.mxu0 0
    %683 = vmatprep.subr.bf16.mxu0 0
    %684 = vmatpush1.bf16.msra.mxu0 0
    %685 = vmatprep.subr.bf16.mxu0 0
    %686 = vmatpush1.bf16.msra.mxu0 0
    %687 = vmatprep.subr.bf16.mxu0 0
    %688 = vmatpush1.bf16.msra.mxu0 0
    %689 = vmatprep.subr.bf16.mxu0 0
    %690 = vmatpush1.bf16.msra.mxu0 0
    %691 = vmatprep.subr.bf16.mxu0 0
    %692 = vmatpush1.bf16.msra.mxu0 0
    %693 = vmatprep.subr.bf16.mxu0 0
    %694 = vmatpush1.bf16.msra.mxu0 0
    %695 = vmatprep.subr.bf16.mxu0 0
    %696 = vmatpush1.bf16.msra.mxu0 0
    %697 = vmatprep.subr.bf16.mxu0 0
    %698 = vmatpush1.bf16.msra.mxu0 0
    %699 = vmatprep.subr.bf16.mxu0 0
    %700 = vmatpush1.bf16.msra.mxu0 0
    %701 = vmatprep.mubr.bf16.mxu0 0
    %702 = vmatmul.mubr.bf16.gmra.mrb[0].mxu0 %v664
    %v703 = vpop.f32.mrb[0].mxu0
    %v704 = vadd.f32 0.0, %v703
    %v705 = vpop.f32.mrb[0].mxu0
    %v706 = vpop.f32.mrb[0].mxu0
    %v707 = vpop.f32.mrb[0].mxu0
    %708 = vdwg.mxu0
    %v709 = vpack.c.bf16 %v704, %v655
    %v710 = vld [vmem:[#allocation11 + $0x8] sm:$0xff]
    %v711 = vpack.c.bf16 %v710, %v710
    %v713 = vsel %vm270, %v709, 0
    %v716 = vsel %vm390, %v711, 0
    %718 = vmatprep.subr.bf16.mxu0 0
    %719 = vmatpush1.bf16.msra.mxu0 %v716
    %720 = vmatprep.subr.bf16.mxu0 0
    %721 = vmatpush1.bf16.msra.mxu0 0
    %722 = vmatprep.subr.bf16.mxu0 0
    %723 = vmatpush1.bf16.msra.mxu0 0
    %724 = vmatprep.subr.bf16.mxu0 0
    %725 = vmatpush1.bf16.msra.mxu0 0
    %726 = vmatprep.subr.bf16.mxu0 0
    %727 = vmatpush1.bf16.msra.mxu0 0
    %728 = vmatprep.subr.bf16.mxu0 0
    %729 = vmatpush1.bf16.msra.mxu0 0
    %730 = vmatprep.subr.bf16.mxu0 0
    %731 = vmatpush1.bf16.msra.mxu0 0
    %732 = vmatprep.subr.bf16.mxu0 0
    %733 = vmatpush1.bf16.msra.mxu0 0
    %734 = vmatprep.subr.bf16.mxu0 0
    %735 = vmatpush1.bf16.msra.mxu0 0
    %736 = vmatprep.subr.bf16.mxu0 0
    %737 = vmatpush1.bf16.msra.mxu0 0
    %738 = vmatprep.subr.bf16.mxu0 0
    %739 = vmatpush1.bf16.msra.mxu0 0
    %740 = vmatprep.subr.bf16.mxu0 0
    %741 = vmatpush1.bf16.msra.mxu0 0
    %742 = vmatprep.subr.bf16.mxu0 0
    %743 = vmatpush1.bf16.msra.mxu0 0
    %744 = vmatprep.subr.bf16.mxu0 0
    %745 = vmatpush1.bf16.msra.mxu0 0
    %746 = vmatprep.subr.bf16.mxu0 0
    %747 = vmatpush1.bf16.msra.mxu0 0
    %748 = vmatprep.subr.bf16.mxu0 0
    %749 = vmatpush1.bf16.msra.mxu0 0
    %750 = vmatprep.mubr.bf16.mxu0 0
    %751 = vmatmul.mubr.bf16.gmra.mrb[0].mxu0 %v713
    %v752 = vpop.f32.mrb[0].mxu0
    %v753 = vadd.f32 0.0, %v752
    %v754 = vpop.f32.mrb[0].mxu0
    %v755 = vpop.f32.mrb[0].mxu0
    %v756 = vadd.f32 0.0, %v755
    %v757 = vpop.f32.mrb[0].mxu0
    %758 = vdwg.mxu0
    %v760 = vsel %vm270, %v480, 0
    %v763 = vsel %vm390, %v482, 0
    %765 = vmatprep.subr.bf16.mxu0 0
    %766 = vmatpush1.bf16.msra.mxu0 %v763
    %767 = vmatprep.subr.bf16.mxu0 0
    %768 = vmatpush1.bf16.msra.mxu0 0
    %769 = vmatprep.subr.bf16.mxu0 0
    %770 = vmatpush1.bf16.msra.mxu0 0
    %771 = vmatprep.subr.bf16.mxu0 0
    %772 = vmatpush1.bf16.msra.mxu0 0
    %773 = vmatprep.subr.bf16.mxu0 0
    %774 = vmatpush1.bf16.msra.mxu0 0
    %775 = vmatprep.subr.bf16.mxu0 0
    %776 = vmatpush1.bf16.msra.mxu0 0
    %777 = vmatprep.subr.bf16.mxu0 0
    %778 = vmatpush1.bf16.msra.mxu0 0
    %779 = vmatprep.subr.bf16.mxu0 0
    %780 = vmatpush1.bf16.msra.mxu0 0
    %781 = vmatprep.subr.bf16.mxu0 0
    %782 = vmatpush1.bf16.msra.mxu0 0
    %783 = vmatprep.subr.bf16.mxu0 0
    %784 = vmatpush1.bf16.msra.mxu0 0
    %785 = vmatprep.subr.bf16.mxu0 0
    %786 = vmatpush1.bf16.msra.mxu0 0
    %787 = vmatprep.subr.bf16.mxu0 0
    %788 = vmatpush1.bf16.msra.mxu0 0
    %789 = vmatprep.subr.bf16.mxu0 0
    %790 = vmatpush1.bf16.msra.mxu0 0
    %791 = vmatprep.subr.bf16.mxu0 0
    %792 = vmatpush1.bf16.msra.mxu0 0
    %793 = vmatprep.subr.bf16.mxu0 0
    %794 = vmatpush1.bf16.msra.mxu0 0
    %795 = vmatprep.subr.bf16.mxu0 0
    %796 = vmatpush1.bf16.msra.mxu0 0
    %797 = vmatprep.mubr.bf16.mxu0 0
    %798 = vmatmul.mubr.bf16.gmra.mrb[0].mxu0 %v760
    %v799 = vpop.f32.mrb[0].mxu0
    %v800 = vadd.f32 %v753, %v799
    %v801 = vpop.f32.mrb[0].mxu0
    %v802 = vpop.f32.mrb[0].mxu0
    %v803 = vadd.f32 %v756, %v802
    %v804 = vpop.f32.mrb[0].mxu0
    %805 = vdwg.mxu0
    %806 = vrot.lane.b32.xlu0 %v264, 112
    %v807 = vpop.permute.xlu0 %806
    %808 = vrot.lane.b32.xlu0 %v266, 112
    %v809 = vpop.permute.xlu0 %808
    %v811 = vsel %vm270, %v807, 0
    %v814 = vsel %vm270, %v809, 0
    %816 = vmatprep.subr.bf16.mxu0 0
    %817 = vmatpush1.bf16.xpose.msra.mxu0 %v814
    %818 = vmatprep.subr.bf16.mxu0 0
    %819 = vmatpush1.bf16.xpose.msra.mxu0 0
    %820 = vmatprep.subr.bf16.mxu0 0
    %821 = vmatpush1.bf16.xpose.msra.mxu0 0
    %822 = vmatprep.subr.bf16.mxu0 0
    %823 = vmatpush1.bf16.xpose.msra.mxu0 0
    %824 = vmatprep.subr.bf16.mxu0 0
    %825 = vmatpush1.bf16.xpose.msra.mxu0 0
    %826 = vmatprep.subr.bf16.mxu0 0
    %827 = vmatpush1.bf16.xpose.msra.mxu0 0
    %828 = vmatprep.subr.bf16.mxu0 0
    %829 = vmatpush1.bf16.xpose.msra.mxu0 0
    %830 = vmatprep.subr.bf16.mxu0 0
    %831 = vmatpush1.bf16.xpose.msra.mxu0 0
    %832 = vmatprep.subr.bf16.mxu0 0
    %833 = vmatpush1.bf16.xpose.msra.mxu0 0
    %834 = vmatprep.subr.bf16.mxu0 0
    %835 = vmatpush1.bf16.xpose.msra.mxu0 0
    %836 = vmatprep.subr.bf16.mxu0 0
    %837 = vmatpush1.bf16.xpose.msra.mxu0 0
    %838 = vmatprep.subr.bf16.mxu0 0
    %839 = vmatpush1.bf16.xpose.msra.mxu0 0
    %840 = vmatprep.subr.bf16.mxu0 0
    %841 = vmatpush1.bf16.xpose.msra.mxu0 0
    %842 = vmatprep.subr.bf16.mxu0 0
    %843 = vmatpush1.bf16.xpose.msra.mxu0 0
    %844 = vmatprep.subr.bf16.mxu0 0
    %845 = vmatpush1.bf16.xpose.msra.mxu0 0
    %846 = vmatprep.subr.bf16.mxu0 0
    %847 = vmatpush1.bf16.xpose.msra.mxu0 0
    %848 = vmatprep.mubr.bf16.mxu0 0
    %849 = vmatmul.mubr.bf16.gmra.mrb[0].mxu0 %v811
    %v850 = vpop.f32.mrb[0].mxu0
    %v851 = vadd.f32 0.0, %v850
    %v852 = vpop.f32.mrb[0].mxu0
    %v853 = vpop.f32.mrb[0].mxu0
    %v854 = vpop.f32.mrb[0].mxu0
    %855 = vdwg.mxu0
    %856 = vrot.lane.b32.xlu0 %v265, 112
    %v857 = vpop.permute.xlu0 %856
    %858 = vrot.lane.b32.xlu0 %v267, 112
    %v859 = vpop.permute.xlu0 %858
    %v861 = vsel %vm270, %v857, 0
    %v864 = vsel %vm270, %v859, 0
    %866 = vmatprep.subr.bf16.mxu0 0
    %867 = vmatpush1.bf16.xpose.msra.mxu0 %v864
    %868 = vmatprep.subr.bf16.mxu0 0
    %869 = vmatpush1.bf16.xpose.msra.mxu0 0
    %870 = vmatprep.subr.bf16.mxu0 0
    %871 = vmatpush1.bf16.xpose.msra.mxu0 0
    %872 = vmatprep.subr.bf16.mxu0 0
    %873 = vmatpush1.bf16.xpose.msra.mxu0 0
    %874 = vmatprep.subr.bf16.mxu0 0
    %875 = vmatpush1.bf16.xpose.msra.mxu0 0
    %876 = vmatprep.subr.bf16.mxu0 0
    %877 = vmatpush1.bf16.xpose.msra.mxu0 0
    %878 = vmatprep.subr.bf16.mxu0 0
    %879 = vmatpush1.bf16.xpose.msra.mxu0 0
    %880 = vmatprep.subr.bf16.mxu0 0
    %881 = vmatpush1.bf16.xpose.msra.mxu0 0
    %882 = vmatprep.subr.bf16.mxu0 0
    %883 = vmatpush1.bf16.xpose.msra.mxu0 0
    %884 = vmatprep.subr.bf16.mxu0 0
    %885 = vmatpush1.bf16.xpose.msra.mxu0 0
    %886 = vmatprep.subr.bf16.mxu0 0
    %887 = vmatpush1.bf16.xpose.msra.mxu0 0
    %888 = vmatprep.subr.bf16.mxu0 0
    %889 = vmatpush1.bf16.xpose.msra.mxu0 0
    %890 = vmatprep.subr.bf16.mxu0 0
    %891 = vmatpush1.bf16.xpose.msra.mxu0 0
    %892 = vmatprep.subr.bf16.mxu0 0
    %893 = vmatpush1.bf16.xpose.msra.mxu0 0
    %894 = vmatprep.subr.bf16.mxu0 0
    %895 = vmatpush1.bf16.xpose.msra.mxu0 0
    %896 = vmatprep.subr.bf16.mxu0 0
    %897 = vmatpush1.bf16.xpose.msra.mxu0 0
    %898 = vmatprep.mubr.bf16.mxu0 0
    %899 = vmatmul.mubr.bf16.gmra.mrb[0].mxu0 %v861
    %v900 = vpop.f32.mrb[0].mxu0
    %v901 = vadd.f32 0.0, %v900
    %v902 = vpop.f32.mrb[0].mxu0
    %v903 = vpop.f32.mrb[0].mxu0
    %v904 = vpop.f32.mrb[0].mxu0
    %905 = vdwg.mxu0
    %v906 = vsel %vm270, %v851, -inf
    %907 = vmax.xlane.f32.xlu0 %v906
    %v908 = vpop.xlane.xlu0 %907
    %v909 = vsel %vm270, %v901, -inf
    %910 = vmax.xlane.f32.xlu0 %v909
    %v911 = vpop.xlane.xlu0 %910
    %v912 = vsub.f32 %v851, %v908
    %v913 = vsub.f32 %v901, %v911
    %v914 = vmul.f32 %v912, 1.442695
    %v915 = vpow.pop %v914
    %v916 = vmul.f32 %v913, 1.442695
    %v917 = vpow.pop %v916
    %v918 = vsel %vm270, %v915, 0.0
    %919 = vadd.xlane.f32.xlu0 %v918
    %v920 = vpop.xlane.xlu0 %919
    %v921 = vsel %vm270, %v917, 0.0
    %922 = vadd.xlane.f32.xlu0 %v921
    %v923 = vpop.xlane.xlu0 %922
    %v924 = vrcp.pop %v920
    %v925 = vrcp.pop %v923
    %v926 = vmul.f32 %v915, %v924
    %v927 = vmul.f32 %v917, %v925
    %v928 = vpack.c.bf16 %v926, %v926
    %v929 = vpack.c.bf16 %v927, %v927
    %930 = vrot.lane.b32.xlu0 %v268, 112
    %v931 = vpop.permute.xlu0 %930
    %v933 = vsel %vm270, %v928, 0
    %v936 = vsel %vm390, %v931, 0
    %938 = vmatprep.subr.bf16.mxu0 0
    %939 = vmatpush1.bf16.msra.mxu0 %v936
    %940 = vmatprep.subr.bf16.mxu0 0
    %941 = vmatpush1.bf16.msra.mxu0 0
    %942 = vmatprep.subr.bf16.mxu0 0
    %943 = vmatpush1.bf16.msra.mxu0 0
    %944 = vmatprep.subr.bf16.mxu0 0
    %945 = vmatpush1.bf16.msra.mxu0 0
    %946 = vmatprep.subr.bf16.mxu0 0
    %947 = vmatpush1.bf16.msra.mxu0 0
    %948 = vmatprep.subr.bf16.mxu0 0
    %949 = vmatpush1.bf16.msra.mxu0 0
    %950 = vmatprep.subr.bf16.mxu0 0
    %951 = vmatpush1.bf16.msra.mxu0 0
    %952 = vmatprep.subr.bf16.mxu0 0
    %953 = vmatpush1.bf16.msra.mxu0 0
    %954 = vmatprep.subr.bf16.mxu0 0
    %955 = vmatpush1.bf16.msra.mxu0 0
    %956 = vmatprep.subr.bf16.mxu0 0
    %957 = vmatpush1.bf16.msra.mxu0 0
    %958 = vmatprep.subr.bf16.mxu0 0
    %959 = vmatpush1.bf16.msra.mxu0 0
    %960 = vmatprep.subr.bf16.mxu0 0
    %961 = vmatpush1.bf16.msra.mxu0 0
    %962 = vmatprep.subr.bf16.mxu0 0
    %963 = vmatpush1.bf16.msra.mxu0 0
    %964 = vmatprep.subr.bf16.mxu0 0
    %965 = vmatpush1.bf16.msra.mxu0 0
    %966 = vmatprep.subr.bf16.mxu0 0
    %967 = vmatpush1.bf16.msra.mxu0 0
    %968 = vmatprep.subr.bf16.mxu0 0
    %969 = vmatpush1.bf16.msra.mxu0 0
    %970 = vmatprep.mubr.bf16.mxu0 0
    %971 = vmatmul.mubr.bf16.gmra.mrb[0].mxu0 %v933
    %v972 = vpop.f32.mrb[0].mxu0
    %v973 = vadd.f32 0.0, %v972
    %v974 = vpop.f32.mrb[0].mxu0
    %v975 = vpop.f32.mrb[0].mxu0
    %v976 = vpop.f32.mrb[0].mxu0
    %977 = vdwg.mxu0
    %978 = vrot.lane.b32.xlu0 %v269, 112
    %v979 = vpop.permute.xlu0 %978
    %v981 = vsel %vm270, %v929, 0
    %v984 = vsel %vm390, %v979, 0
    %986 = vmatprep.subr.bf16.mxu0 0
    %987 = vmatpush1.bf16.msra.mxu0 %v984
    %988 = vmatprep.subr.bf16.mxu0 0
    %989 = vmatpush1.bf16.msra.mxu0 0
    %990 = vmatprep.subr.bf16.mxu0 0
    %991 = vmatpush1.bf16.msra.mxu0 0
    %992 = vmatprep.subr.bf16.mxu0 0
    %993 = vmatpush1.bf16.msra.mxu0 0
    %994 = vmatprep.subr.bf16.mxu0 0
    %995 = vmatpush1.bf16.msra.mxu0 0
    %996 = vmatprep.subr.bf16.mxu0 0
    %997 = vmatpush1.bf16.msra.mxu0 0
    %998 = vmatprep.subr.bf16.mxu0 0
    %999 = vmatpush1.bf16.msra.mxu0 0
    %1000 = vmatprep.subr.bf16.mxu0 0
    %1001 = vmatpush1.bf16.msra.mxu0 0
    %1002 = vmatprep.subr.bf16.mxu0 0
    %1003 = vmatpush1.bf16.msra.mxu0 0
    %1004 = vmatprep.subr.bf16.mxu0 0
    %1005 = vmatpush1.bf16.msra.mxu0 0
    %1006 = vmatprep.subr.bf16.mxu0 0
    %1007 = vmatpush1.bf16.msra.mxu0 0
    %1008 = vmatprep.subr.bf16.mxu0 0
    %1009 = vmatpush1.bf16.msra.mxu0 0
    %1010 = vmatprep.subr.bf16.mxu0 0
    %1011 = vmatpush1.bf16.msra.mxu0 0
    %1012 = vmatprep.subr.bf16.mxu0 0
    %1013 = vmatpush1.bf16.msra.mxu0 0
    %1014 = vmatprep.subr.bf16.mxu0 0
    %1015 = vmatpush1.bf16.msra.mxu0 0
    %1016 = vmatprep.subr.bf16.mxu0 0
    %1017 = vmatpush1.bf16.msra.mxu0 0
    %1018 = vmatprep.mubr.bf16.mxu0 0
    %1019 = vmatmul.mubr.bf16.gmra.mrb[0].mxu0 %v981
    %v1020 = vpop.f32.mrb[0].mxu0
    %v1021 = vadd.f32 0.0, %v1020
    %v1022 = vpop.f32.mrb[0].mxu0
    %v1023 = vpop.f32.mrb[0].mxu0
    %v1024 = vpop.f32.mrb[0].mxu0
    %1025 = vdwg.mxu0
    %v1026 = vpack.c.bf16 %v1021, %v973
    %v1027 = vld [vmem:[#allocation11 + $0x10] sm:$0xff]
    %v1028 = vpack.c.bf16 %v1027, %v1027
    %v1030 = vsel %vm270, %v1026, 0
    %v1033 = vsel %vm390, %v1028, 0
    %1035 = vmatprep.subr.bf16.mxu0 0
    %1036 = vmatpush1.bf16.msra.mxu0 %v1033
    %1037 = vmatprep.subr.bf16.mxu0 0
    %1038 = vmatpush1.bf16.msra.mxu0 0
    %1039 = vmatprep.subr.bf16.mxu0 0
    %1040 = vmatpush1.bf16.msra.mxu0 0
    %1041 = vmatprep.subr.bf16.mxu0 0
    %1042 = vmatpush1.bf16.msra.mxu0 0
    %1043 = vmatprep.subr.bf16.mxu0 0
    %1044 = vmatpush1.bf16.msra.mxu0 0
    %1045 = vmatprep.subr.bf16.mxu0 0
    %1046 = vmatpush1.bf16.msra.mxu0 0
    %1047 = vmatprep.subr.bf16.mxu0 0
    %1048 = vmatpush1.bf16.msra.mxu0 0
    %1049 = vmatprep.subr.bf16.mxu0 0
    %1050 = vmatpush1.bf16.msra.mxu0 0
    %1051 = vmatprep.subr.bf16.mxu0 0
    %1052 = vmatpush1.bf16.msra.mxu0 0
    %1053 = vmatprep.subr.bf16.mxu0 0
    %1054 = vmatpush1.bf16.msra.mxu0 0
    %1055 = vmatprep.subr.bf16.mxu0 0
    %1056 = vmatpush1.bf16.msra.mxu0 0
    %1057 = vmatprep.subr.bf16.mxu0 0
    %1058 = vmatpush1.bf16.msra.mxu0 0
    %1059 = vmatprep.subr.bf16.mxu0 0
    %1060 = vmatpush1.bf16.msra.mxu0 0
    %1061 = vmatprep.subr.bf16.mxu0 0
    %1062 = vmatpush1.bf16.msra.mxu0 0
    %1063 = vmatprep.subr.bf16.mxu0 0
    %1064 = vmatpush1.bf16.msra.mxu0 0
    %1065 = vmatprep.subr.bf16.mxu0 0
    %1066 = vmatpush1.bf16.msra.mxu0 0
    %1067 = vmatprep.mubr.bf16.mxu0 0
    %1068 = vmatmul.mubr.bf16.gmra.mrb[0].mxu0 %v1030
    %v1069 = vpop.f32.mrb[0].mxu0
    %v1070 = vadd.f32 0.0, %v1069
    %v1071 = vpop.f32.mrb[0].mxu0
    %v1072 = vpop.f32.mrb[0].mxu0
    %v1073 = vadd.f32 0.0, %v1072
    %v1074 = vpop.f32.mrb[0].mxu0
    %1075 = vdwg.mxu0
    %v1076 = vadd.f32 %v800, %v1070
    %v1077 = vadd.f32 %v803, %v1073
    %1078 = vrot.lane.b32.xlu0 %v264, 104
    %v1079 = vpop.permute.xlu0 %1078
    %1080 = vrot.lane.b32.xlu0 %v266, 104
    %v1081 = vpop.permute.xlu0 %1080
    %v1083 = vsel %vm270, %v1079, 0
    %v1086 = vsel %vm270, %v1081, 0
    %1088 = vmatprep.subr.bf16.mxu0 0
    %1089 = vmatpush1.bf16.xpose.msra.mxu0 %v1086
    %1090 = vmatprep.subr.bf16.mxu0 0
    %1091 = vmatpush1.bf16.xpose.msra.mxu0 0
    %1092 = vmatprep.subr.bf16.mxu0 0
    %1093 = vmatpush1.bf16.xpose.msra.mxu0 0
    %1094 = vmatprep.subr.bf16.mxu0 0
    %1095 = vmatpush1.bf16.xpose.msra.mxu0 0
    %1096 = vmatprep.subr.bf16.mxu0 0
    %1097 = vmatpush1.bf16.xpose.msra.mxu0 0
    %1098 = vmatprep.subr.bf16.mxu0 0
    %1099 = vmatpush1.bf16.xpose.msra.mxu0 0
    %1100 = vmatprep.subr.bf16.mxu0 0
    %1101 = vmatpush1.bf16.xpose.msra.mxu0 0
    %1102 = vmatprep.subr.bf16.mxu0 0
    %1103 = vmatpush1.bf16.xpose.msra.mxu0 0
    %1104 = vmatprep.subr.bf16.mxu0 0
    %1105 = vmatpush1.bf16.xpose.msra.mxu0 0
    %1106 = vmatprep.subr.bf16.mxu0 0
    %1107 = vmatpush1.bf16.xpose.msra.mxu0 0
    %1108 = vmatprep.subr.bf16.mxu0 0
    %1109 = vmatpush1.bf16.xpose.msra.mxu0 0
    %1110 = vmatprep.subr.bf16.mxu0 0
    %1111 = vmatpush1.bf16.xpose.msra.mxu0 0
    %1112 = vmatprep.subr.bf16.mxu0 0
    %1113 = vmatpush1.bf16.xpose.msra.mxu0 0
    %1114 = vmatprep.subr.bf16.mxu0 0
    %1115 = vmatpush1.bf16.xpose.msra.mxu0 0
    %1116 = vmatprep.subr.bf16.mxu0 0
    %1117 = vmatpush1.bf16.xpose.msra.mxu0 0
    %1118 = vmatprep.subr.bf16.mxu0 0
    %1119 = vmatpush1.bf16.xpose.msra.mxu0 0
    %1120 = vmatprep.mubr.bf16.mxu0 0
    %1121 = vmatmul.mubr.bf16.gmra.mrb[0].mxu0 %v1083
    %v1122 = vpop.f32.mrb[0].mxu0
    %v1123 = vadd.f32 0.0, %v1122
    %v1124 = vpop.f32.mrb[0].mxu0
    %v1125 = vpop.f32.mrb[0].mxu0
    %v1126 = vpop.f32.mrb[0].mxu0
    %1127 = vdwg.mxu0
    %1128 = vrot.lane.b32.xlu0 %v265, 104
    %v1129 = vpop.permute.xlu0 %1128
    %1130 = vrot.lane.b32.xlu0 %v267, 104
    %v1131 = vpop.permute.xlu0 %1130
    %v1133 = vsel %vm270, %v1129, 0
    %v1136 = vsel %vm270, %v1131, 0
    %1138 = vmatprep.subr.bf16.mxu0 0
    %1139 = vmatpush1.bf16.xpose.msra.mxu0 %v1136
    %1140 = vmatprep.subr.bf16.mxu0 0
    %1141 = vmatpush1.bf16.xpose.msra.mxu0 0
    %1142 = vmatprep.subr.bf16.mxu0 0
    %1143 = vmatpush1.bf16.xpose.msra.mxu0 0
    %1144 = vmatprep.subr.bf16.mxu0 0
    %1145 = vmatpush1.bf16.xpose.msra.mxu0 0
    %1146 = vmatprep.subr.bf16.mxu0 0
    %1147 = vmatpush1.bf16.xpose.msra.mxu0 0
    %1148 = vmatprep.subr.bf16.mxu0 0
    %1149 = vmatpush1.bf16.xpose.msra.mxu0 0
    %1150 = vmatprep.subr.bf16.mxu0 0
    %1151 = vmatpush1.bf16.xpose.msra.mxu0 0
    %1152 = vmatprep.subr.bf16.mxu0 0
    %1153 = vmatpush1.bf16.xpose.msra.mxu0 0
    %1154 = vmatprep.subr.bf16.mxu0 0
    %1155 = vmatpush1.bf16.xpose.msra.mxu0 0
    %1156 = vmatprep.subr.bf16.mxu0 0
    %1157 = vmatpush1.bf16.xpose.msra.mxu0 0
    %1158 = vmatprep.subr.bf16.mxu0 0
    %1159 = vmatpush1.bf16.xpose.msra.mxu0 0
    %1160 = vmatprep.subr.bf16.mxu0 0
    %1161 = vmatpush1.bf16.xpose.msra.mxu0 0
    %1162 = vmatprep.subr.bf16.mxu0 0
    %1163 = vmatpush1.bf16.xpose.msra.mxu0 0
    %1164 = vmatprep.subr.bf16.mxu0 0
    %1165 = vmatpush1.bf16.xpose.msra.mxu0 0
    %1166 = vmatprep.subr.bf16.mxu0 0
    %1167 = vmatpush1.bf16.xpose.msra.mxu0 0
    %1168 = vmatprep.subr.bf16.mxu0 0
    %1169 = vmatpush1.bf16.xpose.msra.mxu0 0
    %1170 = vmatprep.mubr.bf16.mxu0 0
    %1171 = vmatmul.mubr.bf16.gmra.mrb[0].mxu0 %v1133
    %v1172 = vpop.f32.mrb[0].mxu0
    %v1173 = vadd.f32 0.0, %v1172
    %v1174 = vpop.f32.mrb[0].mxu0
    %v1175 = vpop.f32.mrb[0].mxu0
    %v1176 = vpop.f32.mrb[0].mxu0
    %1177 = vdwg.mxu0
    %v1178 = vsel %vm270, %v1123, -inf
    %1179 = vmax.xlane.f32.xlu0 %v1178
    %v1180 = vpop.xlane.xlu0 %1179
    %v1181 = vsel %vm270, %v1173, -inf
    %1182 = vmax.xlane.f32.xlu0 %v1181
    %v1183 = vpop.xlane.xlu0 %1182
    %v1184 = vsub.f32 %v1123, %v1180
    %v1185 = vsub.f32 %v1173, %v1183
    %v1186 = vmul.f32 %v1184, 1.442695
    %v1187 = vpow.pop %v1186
    %v1188 = vmul.f32 %v1185, 1.442695
    %v1189 = vpow.pop %v1188
    %v1190 = vsel %vm270, %v1187, 0.0
    %1191 = vadd.xlane.f32.xlu0 %v1190
    %v1192 = vpop.xlane.xlu0 %1191
    %v1193 = vsel %vm270, %v1189, 0.0
    %1194 = vadd.xlane.f32.xlu0 %v1193
    %v1195 = vpop.xlane.xlu0 %1194
    %v1196 = vrcp.pop %v1192
    %v1197 = vrcp.pop %v1195
    %v1198 = vmul.f32 %v1187, %v1196
    %v1199 = vmul.f32 %v1189, %v1197
    %v1200 = vpack.c.bf16 %v1198, %v1198
    %v1201 = vpack.c.bf16 %v1199, %v1199
    %1202 = vrot.lane.b32.xlu0 %v268, 104
    %v1203 = vpop.permute.xlu0 %1202
    %v1205 = vsel %vm270, %v1200, 0
    %v1208 = vsel %vm390, %v1203, 0
    %1210 = vmatprep.subr.bf16.mxu0 0
    %1211 = vmatpush1.bf16.msra.mxu0 %v1208
    %1212 = vmatprep.subr.bf16.mxu0 0
    %1213 = vmatpush1.bf16.msra.mxu0 0
    %1214 = vmatprep.subr.bf16.mxu0 0
    %1215 = vmatpush1.bf16.msra.mxu0 0
    %1216 = vmatprep.subr.bf16.mxu0 0
    %1217 = vmatpush1.bf16.msra.mxu0 0
    %1218 = vmatprep.subr.bf16.mxu0 0
    %1219 = vmatpush1.bf16.msra.mxu0 0
    %1220 = vmatprep.subr.bf16.mxu0 0
    %1221 = vmatpush1.bf16.msra.mxu0 0
    %1222 = vmatprep.subr.bf16.mxu0 0
    %1223 = vmatpush1.bf16.msra.mxu0 0
    %1224 = vmatprep.subr.bf16.mxu0 0
    %1225 = vmatpush1.bf16.msra.mxu0 0
    %1226 = vmatprep.subr.bf16.mxu0 0
    %1227 = vmatpush1.bf16.msra.mxu0 0
    %1228 = vmatprep.subr.bf16.mxu0 0
    %1229 = vmatpush1.bf16.msra.mxu0 0
    %1230 = vmatprep.subr.bf16.mxu0 0
    %1231 = vmatpush1.bf16.msra.mxu0 0
    %1232 = vmatprep.subr.bf16.mxu0 0
    %1233 = vmatpush1.bf16.msra.mxu0 0
    %1234 = vmatprep.subr.bf16.mxu0 0
    %1235 = vmatpush1.bf16.msra.mxu0 0
    %1236 = vmatprep.subr.bf16.mxu0 0
    %1237 = vmatpush1.bf16.msra.mxu0 0
    %1238 = vmatprep.subr.bf16.mxu0 0
    %1239 = vmatpush1.bf16.msra.mxu0 0
    %1240 = vmatprep.subr.bf16.mxu0 0
    %1241 = vmatpush1.bf16.msra.mxu0 0
    %1242 = vmatprep.mubr.bf16.mxu0 0
    %1243 = vmatmul.mubr.bf16.gmra.mrb[0].mxu0 %v1205
    %v1244 = vpop.f32.mrb[0].mxu0
    %v1245 = vadd.f32 0.0, %v1244
    %v1246 = vpop.f32.mrb[0].mxu0
    %v1247 = vpop.f32.mrb[0].mxu0
    %v1248 = vpop.f32.mrb[0].mxu0
    %1249 = vdwg.mxu0
    %1250 = vrot.lane.b32.xlu0 %v269, 104
    %v1251 = vpop.permute.xlu0 %1250
    %v1253 = vsel %vm270, %v1201, 0
    %v1256 = vsel %vm390, %v1251, 0
    %1258 = vmatprep.subr.bf16.mxu0 0
    %1259 = vmatpush1.bf16.msra.mxu0 %v1256
    %1260 = vmatprep.subr.bf16.mxu0 0
    %1261 = vmatpush1.bf16.msra.mxu0 0
    %1262 = vmatprep.subr.bf16.mxu0 0
    %1263 = vmatpush1.bf16.msra.mxu0 0
    %1264 = vmatprep.subr.bf16.mxu0 0
    %1265 = vmatpush1.bf16.msra.mxu0 0
    %1266 = vmatprep.subr.bf16.mxu0 0
    %1267 = vmatpush1.bf16.msra.mxu0 0
    %1268 = vmatprep.subr.bf16.mxu0 0
    %1269 = vmatpush1.bf16.msra.mxu0 0
    %1270 = vmatprep.subr.bf16.mxu0 0
    %1271 = vmatpush1.bf16.msra.mxu0 0
    %1272 = vmatprep.subr.bf16.mxu0 0
    %1273 = vmatpush1.bf16.msra.mxu0 0
    %1274 = vmatprep.subr.bf16.mxu0 0
    %1275 = vmatpush1.bf16.msra.mxu0 0
    %1276 = vmatprep.subr.bf16.mxu0 0
    %1277 = vmatpush1.bf16.msra.mxu0 0
    %1278 = vmatprep.subr.bf16.mxu0 0
    %1279 = vmatpush1.bf16.msra.mxu0 0
    %1280 = vmatprep.subr.bf16.mxu0 0
    %1281 = vmatpush1.bf16.msra.mxu0 0
    %1282 = vmatprep.subr.bf16.mxu0 0
    %1283 = vmatpush1.bf16.msra.mxu0 0
    %1284 = vmatprep.subr.bf16.mxu0 0
    %1285 = vmatpush1.bf16.msra.mxu0 0
    %1286 = vmatprep.subr.bf16.mxu0 0
    %1287 = vmatpush1.bf16.msra.mxu0 0
    %1288 = vmatprep.subr.bf16.mxu0 0
    %1289 = vmatpush1.bf16.msra.mxu0 0
    %1290 = vmatprep.mubr.bf16.mxu0 0
    %1291 = vmatmul.mubr.bf16.gmra.mrb[0].mxu0 %v1253
    %v1292 = vpop.f32.mrb[0].mxu0
    %v1293 = vadd.f32 0.0, %v1292
    %v1294 = vpop.f32.mrb[0].mxu0
    %v1295 = vpop.f32.mrb[0].mxu0
    %v1296 = vpop.f32.mrb[0].mxu0
    %1297 = vdwg.mxu0
    %v1298 = vpack.c.bf16 %v1293, %v1245
    %v1299 = vld [vmem:[#allocation11 + $0x18] sm:$0xff]
    %v1300 = vpack.c.bf16 %v1299, %v1299
    %v1302 = vsel %vm270, %v1298, 0
    %v1305 = vsel %vm390, %v1300, 0
    %1307 = vmatprep.subr.bf16.mxu0 0
    %1308 = vmatpush1.bf16.msra.mxu0 %v1305
    %1309 = vmatprep.subr.bf16.mxu0 0
    %1310 = vmatpush1.bf16.msra.mxu0 0
    %1311 = vmatprep.subr.bf16.mxu0 0
    %1312 = vmatpush1.bf16.msra.mxu0 0
    %1313 = vmatprep.subr.bf16.mxu0 0
    %1314 = vmatpush1.bf16.msra.mxu0 0
    %1315 = vmatprep.subr.bf16.mxu0 0
    %1316 = vmatpush1.bf16.msra.mxu0 0
    %1317 = vmatprep.subr.bf16.mxu0 0
    %1318 = vmatpush1.bf16.msra.mxu0 0
    %1319 = vmatprep.subr.bf16.mxu0 0
    %1320 = vmatpush1.bf16.msra.mxu0 0
    %1321 = vmatprep.subr.bf16.mxu0 0
    %1322 = vmatpush1.bf16.msra.mxu0 0
    %1323 = vmatprep.subr.bf16.mxu0 0
    %1324 = vmatpush1.bf16.msra.mxu0 0
    %1325 = vmatprep.subr.bf16.mxu0 0
    %1326 = vmatpush1.bf16.msra.mxu0 0
    %1327 = vmatprep.subr.bf16.mxu0 0
    %1328 = vmatpush1.bf16.msra.mxu0 0
    %1329 = vmatprep.subr.bf16.mxu0 0
    %1330 = vmatpush1.bf16.msra.mxu0 0
    %1331 = vmatprep.subr.bf16.mxu0 0
    %1332 = vmatpush1.bf16.msra.mxu0 0
    %1333 = vmatprep.subr.bf16.mxu0 0
    %1334 = vmatpush1.bf16.msra.mxu0 0
    %1335 = vmatprep.subr.bf16.mxu0 0
    %1336 = vmatpush1.bf16.msra.mxu0 0
    %1337 = vmatprep.subr.bf16.mxu0 0
    %1338 = vmatpush1.bf16.msra.mxu0 0
    %1339 = vmatprep.mubr.bf16.mxu0 0
    %1340 = vmatmul.mubr.bf16.gmra.mrb[0].mxu0 %v1302
    %v1341 = vpop.f32.mrb[0].mxu0
    %v1342 = vadd.f32 0.0, %v1341
    %v1343 = vpop.f32.mrb[0].mxu0
    %v1344 = vpop.f32.mrb[0].mxu0
    %v1345 = vadd.f32 0.0, %v1344
    %v1346 = vpop.f32.mrb[0].mxu0
    %1347 = vdwg.mxu0
    %v1348 = vadd.f32 %v1076, %v1342
    %v1349 = vadd.f32 %v1077, %v1345
    %v1350 = vld [vmem:[%s6] sm:$0x1]
    %v1352 = vlaneseq
    %v1353 = vshrl.u32 %v1352, 7
    %v1354 = vsub.s32 0, %v1353
    %v1355 = vrot.slane %v1350, %v1354
    %v1357 = vadd.f32 %v1348, %v1355
    %v1358 = vadd.f32 %v1349, %v1355
    %1359 = vst.msk [vmem:[#allocation13] sm:$0xff] %vm134, %v1357
    %1360 = vst.msk [vmem:[#allocation13 + $0x8] sm:$0xff] %vm134, %v1358
    // Predicated region
    $region54: #{tpu_custom_call.1} parent=1 // pred_check
      _
    $region55: #{tpu_custom_call.1} parent=1 // pred_check_branch
      %1362 = sbr.rel (0) target = $region57
    $region56: #{tpu_custom_call.1} parent=1 // pred_region
      %s1364 = ssub.s32 256, 256
      %1365 = vsyncadd [#allocation4], %s1364
      %s1366 = sshll.u32 [#allocation13], 4
      %s1367 = int_to_ptr.vmem [resolvable:$true] %s1366
      %1372 = dma.vmem_to_hbm [thread:$0]  %s1367, 256, %s7, [#allocation4], 128, 128, 8
    $region57: #{tpu_custom_call.1} parent=1 // pred_fallthru
      _
    // Predicated region
    $region58: #{tpu_custom_call.1} parent=1 // pred_check
      _
    $region59: #{tpu_custom_call.1} parent=1 // pred_check_branch
      %1374 = sbr.rel (0) target = $region61
    $region60: #{tpu_custom_call.1} parent=1 // pred_region
      %1375 = dma.done [#allocation4], 256
    $region61: #{tpu_custom_call.1} parent=1 // pred_fallthru
      _
    %1376 = vsyncpa [#allocation3], 1
    %1377 = vsyncpa [#allocation6], 1
    %1378 = vsyncpa [#allocation9], 1
    %1379 = vsyncpa [#allocation12], 1
    %1380 = vsyncpa [#allocation4], 1

</llo_original>
